<compile_context>
chip_gen: v7x
topology: tpu7x:2x2x1
jax: 0.10.0
libtpu: 0.0.40
codegen_flags: <defaults>
</compile_context>

<pallas_src>
import numpy as np
import jax
import jax.numpy as jnp
from jax.experimental import pallas as pl
from jax.experimental.pallas import tpu as pltpu


# ----------------------------------------------------------------------------
# Kernel: one grid step == one batch tile of TB rows.
# ----------------------------------------------------------------------------
def mla_kernel(enc_ref, dh_ref, ret_ref,
               enc_att_w_ref, enc_att_b_ref,
               dec_att_w_ref, dec_att_b_ref,
               full_att_w_ref, full_att_b_ref,
               cat_w_ref, cat_b_ref,
               full_matt_w_ref, full_matt_b_ref,
               ctx_ref, alpha_hat_ref):
    enc_bf = enc_ref[...]                                   # (TB, P, R) bf16
    TB, P, R = enc_bf.shape
    A = enc_att_w_ref.shape[-1]

    # ---- first-level attention ------------------------------------------------
    # encoder projection: (TB*P, R) @ (R, A)  -- bf16 MXU, f32 accumulate
    att_v = jnp.dot(enc_bf.reshape(TB * P, R), enc_att_w_ref[...],
                    preferred_element_type=jnp.float32)
    att_v = att_v.reshape(TB, P, A) + enc_att_b_ref[...]    # (TB, P, A) f32

    # decoder projection: (TB, D) @ (D, A)
    att_h = (jnp.dot(dh_ref[...], dec_att_w_ref[...],
                     preferred_element_type=jnp.float32)
             + dec_att_b_ref[...])                          # (TB, A) f32

    s = jnp.tanh(att_v + att_h[:, None, :])                 # (TB, P, A)

    # full_att: width-1 output => VPU multiply + lane reduce (not an MXU matmul)
    w_fa = full_att_w_ref[...].astype(jnp.float32)          # (1, A)
    att = jnp.sum(s * w_fa[None, :, :], axis=-1) + full_att_b_ref[...]   # (TB, P)

    # softmax over num_pixels
    m = jnp.max(att, axis=1, keepdims=True)
    ex = jnp.exp(att - m)
    alpha = ex / jnp.sum(ex, axis=1, keepdims=True)         # (TB, P)

    # attention-weighted encoding.  VPU multiply + sublane reduce; for large P*R
    # prefer: jnp.einsum('bp,bpr->br', alpha, enc, preferred_element_type=f32).
    enc_f32 = enc_bf.astype(jnp.float32)
    visual = jnp.sum(enc_f32 * alpha[:, :, None], axis=1)   # (TB, R) f32

    # ---- second-level (multi-level) attention ----------------------------------
    # cat_att applied to the two "rows" (visual_context, retrieved_target) separately;
    # mathematically identical to cat + matmul on the (B, 2, R) tensor.
    att_vr_v = (jnp.dot(visual.astype(jnp.bfloat16), cat_w_ref[...],
                        preferred_element_type=jnp.float32) + cat_b_ref[...])   # (TB, A)
    att_vr_r = (jnp.dot(ret_ref[...], cat_w_ref[...],
                        preferred_element_type=jnp.float32) + cat_b_ref[...])   # (TB, A)

    w_fm = full_matt_w_ref[...].astype(jnp.float32)         # (1, A)
    ah_v = (jnp.sum(jnp.tanh(att_vr_v + att_h) * w_fm, axis=-1, keepdims=True)
            + full_matt_b_ref[...])                         # (TB, 1)
    ah_r = (jnp.sum(jnp.tanh(att_vr_r + att_h) * w_fm, axis=-1, keepdims=True)
            + full_matt_b_ref[...])                         # (TB, 1)

    # softmax over the 2 levels, computed without concatenation
    m2 = jnp.maximum(ah_v, ah_r)
    e_v = jnp.exp(ah_v - m2)
    e_r = jnp.exp(ah_r - m2)
    denom = e_v + e_r
    a_v = e_v / denom                                       # (TB, 1)
    a_r = e_r / denom                                       # (TB, 1)

    ret_f32 = ret_ref[...].astype(jnp.float32)
    ctx_ref[...] = a_v * visual + a_r * ret_f32             # (TB, R)

    # alpha_hat = [a_v, a_r] along the last axis (width-2 output)
    col = jax.lax.broadcasted_iota(jnp.int32, (TB, 2), 1)
    alpha_hat_ref[...] = jnp.where(col == 0, a_v, a_r)


# ----------------------------------------------------------------------------
# Wrapper: dtype prep, batch padding, pallas_call
# ----------------------------------------------------------------------------
def multi_level_attention(params, encoder_out, decoder_hidden, retrieved_target,
                          *, block_b=8):
    B, P, R = encoder_out.shape
    D = decoder_hidden.shape[-1]
    A = params['enc_att_w'].shape[-1]

    # pad batch to a multiple of the batch tile (sublane-aligned)
    nb = (B + block_b - 1) // block_b
    B_pad = nb * block_b
    pad = B_pad - B
    enc = jnp.pad(encoder_out, ((0, pad), (0, 0), (0, 0))).astype(jnp.bfloat16)
    dh = jnp.pad(decoder_hidden, ((0, pad), (0, 0))).astype(jnp.bfloat16)
    ret = jnp.pad(retrieved_target, ((0, pad), (0, 0))).astype(jnp.bfloat16)

    # bf16 matmul weights, f32 biases
    w_names = ['enc_att_w', 'enc_att_b', 'dec_att_w', 'dec_att_b',
               'full_att_w', 'full_att_b', 'cat_w', 'cat_b',
               'full_matt_w', 'full_matt_b']
    weights = [params[n].astype(jnp.float32) if n.endswith('_b')
               else params[n].astype(jnp.bfloat16) for n in w_names]

    in_specs = [
        pl.BlockSpec((block_b, P, R), lambda i: (i, 0, 0)),   # encoder_out tile
        pl.BlockSpec((block_b, D), lambda i: (i, 0)),         # decoder_hidden tile
        pl.BlockSpec((block_b, R), lambda i: (i, 0)),         # retrieved_target tile
    ] + [pl.BlockSpec(w.shape, lambda i: (0, 0)) for w in weights]  # resident weights

    out_specs = [
        pl.BlockSpec((block_b, R), lambda i: (i, 0)),         # multilevel_context
        pl.BlockSpec((block_b, 2), lambda i: (i, 0)),         # alpha_hat
    ]

    grid_spec = pltpu.PrefetchScalarGridSpec(
        num_scalar_prefetch=0,
        grid=(nb,),
        in_specs=in_specs,
        out_specs=out_specs,
    )

    ctx_pad, alpha_pad = pl.pallas_call(
        mla_kernel,
        out_shape=(jax.ShapeDtypeStruct((B_pad, R), jnp.float32),
                   jax.ShapeDtypeStruct((B_pad, 2), jnp.float32)),
        grid_spec=grid_spec,
        compiler_params=pltpu.CompilerParams(
            dimension_semantics=("parallel",),        # batch tiles -> both TCs on v7x
            vmem_limit_bytes=32 * 1024 * 1024),
    )(enc, dh, ret, *weights)

    return ctx_pad[:B], alpha_pad[:B]


# ----------------------------------------------------------------------------
# Numpy reference (float64 math on bf16-rounded matmul operands, mirrors torch)
# ----------------------------------------------------------------------------
def reference_forward(p, enc, dh, ret):
    def softmax(x, axis):
        m = x.max(axis=axis, keepdims=True)
        e = np.exp(x - m)
        return e / e.sum(axis=axis, keepdims=True)

    att_v = enc @ p['enc_att_w'] + p['enc_att_b']                       # (B,P,A)
    att_h = dh @ p['dec_att_w'] + p['dec_att_b']                        # (B,A)
    att = (np.tanh(att_v + att_h[:, None, :]) * p['full_att_w'][None]).sum(-1) \
          + p['full_att_b'][0, 0]                                       # (B,P)
    alpha = softmax(att, axis=1)
    visual = (enc * alpha[:, :, None]).sum(1)                           # (B,R)
    vr = np.stack([visual, ret], axis=1)                                # (B,2,R)
    att_vr = vr @ p['cat_w'] + p['cat_b']                               # (B,2,A)
    att_hat = (np.tanh(att_vr + att_h[:, None, :]) * p['full_matt_w'][None]).sum(-1) \
              + p['full_matt_b'][0, 0]                                  # (B,2)
    alpha_hat = softmax(att_hat, axis=1)
    ml = (vr * alpha_hat[:, :, None]).sum(1)                            # (B,R)
    return ml, alpha_hat


# ----------------------------------------------------------------------------
if __name__ == "__main__":
    # Small, lane/sublane-aligned configuration
    B, P = 8, 16            # batch, num_pixels
    R, D, A = 128, 128, 128  # retrieved_dim, decoder_dim, attention_dim

    key = jax.random.PRNGKey(0)
    ks = jax.random.split(key, 16)
    u = lambda k, shape, s=0.1: jax.random.uniform(k, shape, jnp.float32, -s, s)

    # PyTorch (out,in) Linear weights stored pre-transposed as (in,out);
    # width-1 projections kept as (1, A) row vectors (same layout as torch).
    params = {
        'enc_att_w': u(ks[0], (R, A)),   'enc_att_b': u(ks[1], (1, A)),
        'dec_att_w': u(ks[2], (D, A)),   'dec_att_b': u(ks[3], (1, A)),
        'full_att_w': u(ks[4], (1, A)),  'full_att_b': u(ks[5], (1, 1)),
        'cat_w': u(ks[6], (R, A)),       'cat_b': u(ks[7], (1, A)),
        'full_matt_w': u(ks[8], (1, A)), 'full_matt_b': u(ks[9], (1, 1)),
    }
    encoder_out = 0.5 * jax.random.normal(ks[10], (B, P, R), jnp.float32)
    decoder_hidden = 0.5 * jax.random.normal(ks[11], (B, D), jnp.float32)
    retrieved_target = 0.5 * jax.random.normal(ks[12], (B, R), jnp.float32)

    ctx, alpha_hat = multi_level_attention(params, encoder_out, decoder_hidden,
                                           retrieved_target)
    ctx = jax.block_until_ready(ctx)
    alpha_hat = jax.block_until_ready(alpha_hat)

    # reference uses the same bf16-rounded matmul operands as the kernel
    rb = lambda x: np.asarray(jnp.asarray(x).astype(jnp.bfloat16).astype(jnp.float32),
                              np.float64)
    p_ref = {n: (np.asarray(v, np.float64) if n.endswith('_b') else rb(v))
             for n, v in params.items()}
    ctx_ref, alpha_ref = reference_forward(p_ref, rb(encoder_out),
                                           rb(decoder_hidden), rb(retrieved_target))

    np.testing.assert_allclose(np.asarray(ctx), ctx_ref, rtol=2e-2, atol=2e-2)
    np.testing.assert_allclose(np.asarray(alpha_hat), alpha_ref, rtol=2e-2, atol=2e-2)
    print("KERNEL_OK")
</pallas_src>

<mosaic_0001>
module attributes {stable_mosaic.version = 11 : i64} {
  func.func @mla_kernel(%arg0: i32, %arg1: memref<8x16x128xbf16, #tpu.memory_space<vmem>>, %arg2: memref<8x128xbf16, #tpu.memory_space<vmem>>, %arg3: memref<8x128xbf16, #tpu.memory_space<vmem>>, %arg4: memref<128x128xbf16, #tpu.memory_space<vmem>>, %arg5: memref<1x128xf32, #tpu.memory_space<vmem>>, %arg6: memref<128x128xbf16, #tpu.memory_space<vmem>>, %arg7: memref<1x128xf32, #tpu.memory_space<vmem>>, %arg8: memref<1x128xbf16, #tpu.memory_space<vmem>>, %arg9: memref<1x1xf32, #tpu.memory_space<vmem>>, %arg10: memref<128x128xbf16, #tpu.memory_space<vmem>>, %arg11: memref<1x128xf32, #tpu.memory_space<vmem>>, %arg12: memref<1x128xbf16, #tpu.memory_space<vmem>>, %arg13: memref<1x1xf32, #tpu.memory_space<vmem>>, %arg14: memref<8x128xf32, #tpu.memory_space<vmem>>, %arg15: memref<8x2xf32, #tpu.memory_space<vmem>>) attributes {dimension_semantics = [#tpu.dimension_semantics<parallel>], iteration_bounds = array<i64: 1>, scalar_prefetch = 0 : i64, scratch_operands = 0 : i64, tpu.core_type = #tpu.core_type<tc>, window_params = [{transform_indices = @transform_0, window_bounds = array<i64: 8, 16, 128>}, {transform_indices = @transform_1, window_bounds = array<i64: 8, 128>}, {transform_indices = @transform_2, window_bounds = array<i64: 8, 128>}, {pipeline_mode = #tpu.pipeline_mode<synchronous>, transform_indices = @transform_3, window_bounds = array<i64: 128, 128>}, {pipeline_mode = #tpu.pipeline_mode<synchronous>, transform_indices = @transform_4, window_bounds = array<i64: 1, 128>}, {pipeline_mode = #tpu.pipeline_mode<synchronous>, transform_indices = @transform_5, window_bounds = array<i64: 128, 128>}, {pipeline_mode = #tpu.pipeline_mode<synchronous>, transform_indices = @transform_6, window_bounds = array<i64: 1, 128>}, {pipeline_mode = #tpu.pipeline_mode<synchronous>, transform_indices = @transform_7, window_bounds = array<i64: 1, 128>}, {pipeline_mode = #tpu.pipeline_mode<synchronous>, transform_indices = @transform_8, window_bounds = array<i64: 1, 1>}, {pipeline_mode = #tpu.pipeline_mode<synchronous>, transform_indices = @transform_9, window_bounds = array<i64: 128, 128>}, {pipeline_mode = #tpu.pipeline_mode<synchronous>, transform_indices = @transform_10, window_bounds = array<i64: 1, 128>}, {pipeline_mode = #tpu.pipeline_mode<synchronous>, transform_indices = @transform_11, window_bounds = array<i64: 1, 128>}, {pipeline_mode = #tpu.pipeline_mode<synchronous>, transform_indices = @transform_12, window_bounds = array<i64: 1, 1>}, {transform_indices = @transform_13, window_bounds = array<i64: 8, 128>}, {transform_indices = @transform_14, window_bounds = array<i64: 8, 2>}]} {
    %c0 = arith.constant 0 : index
    %c0_0 = arith.constant 0 : index
    %c0_1 = arith.constant 0 : index
    %0 = vector.load %arg1[%c0, %c0_0, %c0_1] : memref<8x16x128xbf16, #tpu.memory_space<vmem>>, vector<8x16x128xbf16>
    %1 = vector.shape_cast %0 : vector<8x16x128xbf16> to vector<128x128xbf16>
    %c0_2 = arith.constant 0 : index
    %c0_3 = arith.constant 0 : index
    %2 = vector.load %arg4[%c0_2, %c0_3] : memref<128x128xbf16, #tpu.memory_space<vmem>>, vector<128x128xbf16>
    %cst = arith.constant dense<0.000000e+00> : vector<128x128xf32>
    %3 = tpu.matmul %1, %2, %cst {dimension_numbers = #tpu.dot_dimension_numbers<[1], [0], [0], [1], [0, 0, 1, 1], [], []>} : vector<128x128xbf16>, vector<128x128xbf16>, vector<128x128xf32> -> vector<128x128xf32>
    %4 = vector.shape_cast %3 : vector<128x128xf32> to vector<8x16x128xf32>
    %c0_4 = arith.constant 0 : index
    %c0_5 = arith.constant 0 : index
    %5 = vector.load %arg5[%c0_4, %c0_5] : memref<1x128xf32, #tpu.memory_space<vmem>>, vector<1x128xf32>
    %6 = vector.shape_cast %5 : vector<1x128xf32> to vector<1x1x128xf32>
    %7 = vector.broadcast %6 : vector<1x1x128xf32> to vector<8x16x128xf32>
    %8 = arith.addf %4, %7 : vector<8x16x128xf32>
    %c0_6 = arith.constant 0 : index
    %c0_7 = arith.constant 0 : index
    %9 = vector.load %arg2[%c0_6, %c0_7] : memref<8x128xbf16, #tpu.memory_space<vmem>>, vector<8x128xbf16>
    %c0_8 = arith.constant 0 : index
    %c0_9 = arith.constant 0 : index
    %10 = vector.load %arg6[%c0_8, %c0_9] : memref<128x128xbf16, #tpu.memory_space<vmem>>, vector<128x128xbf16>
    %cst_10 = arith.constant dense<0.000000e+00> : vector<8x128xf32>
    %11 = tpu.matmul %9, %10, %cst_10 {dimension_numbers = #tpu.dot_dimension_numbers<[1], [0], [0], [1], [0, 0, 1, 1], [], []>} : vector<8x128xbf16>, vector<128x128xbf16>, vector<8x128xf32> -> vector<8x128xf32>
    %c0_11 = arith.constant 0 : index
    %c0_12 = arith.constant 0 : index
    %12 = vector.load %arg7[%c0_11, %c0_12] : memref<1x128xf32, #tpu.memory_space<vmem>>, vector<1x128xf32>
    %13 = vector.broadcast %12 : vector<1x128xf32> to vector<8x128xf32>
    %14 = arith.addf %11, %13 : vector<8x128xf32>
    %15 = vector.shape_cast %14 : vector<8x128xf32> to vector<8x1x128xf32>
    %16 = vector.broadcast %15 : vector<8x1x128xf32> to vector<8x16x128xf32>
    %17 = arith.addf %8, %16 : vector<8x16x128xf32>
    %18 = math.tanh %17 : vector<8x16x128xf32>
    %c0_13 = arith.constant 0 : index
    %c0_14 = arith.constant 0 : index
    %19 = vector.load %arg8[%c0_13, %c0_14] : memref<1x128xbf16, #tpu.memory_space<vmem>>, vector<1x128xbf16>
    %20 = arith.extf %19 : vector<1x128xbf16> to vector<1x128xf32>
    %21 = vector.shape_cast %20 : vector<1x128xf32> to vector<1x1x128xf32>
    %22 = vector.broadcast %21 : vector<1x1x128xf32> to vector<8x16x128xf32>
    %23 = arith.mulf %18, %22 : vector<8x16x128xf32>
    %cst_15 = arith.constant dense<0.000000e+00> : vector<8x16xf32>
    %24 = vector.multi_reduction <add>, %23, %cst_15 [2] : vector<8x16x128xf32> to vector<8x16xf32>
    %c0_16 = arith.constant 0 : index
    %c0_17 = arith.constant 0 : index
    %25 = vector.load %arg9[%c0_16, %c0_17] : memref<1x1xf32, #tpu.memory_space<vmem>>, vector<1x1xf32>
    %26 = vector.broadcast %25 : vector<1x1xf32> to vector<8x16xf32>
    %27 = arith.addf %24, %26 : vector<8x16xf32>
    %cst_18 = arith.constant dense<0xFF800000> : vector<8xf32>
    %28 = vector.multi_reduction <maximumf>, %27, %cst_18 [1] : vector<8x16xf32> to vector<8xf32>
    %29 = vector.shape_cast %28 : vector<8xf32> to vector<8x1xf32>
    %30 = vector.broadcast %29 : vector<8x1xf32> to vector<8x16xf32>
    %31 = arith.subf %27, %30 : vector<8x16xf32>
    %32 = math.exp %31 : vector<8x16xf32>
    %cst_19 = arith.constant dense<0.000000e+00> : vector<8xf32>
    %33 = vector.multi_reduction <add>, %32, %cst_19 [1] : vector<8x16xf32> to vector<8xf32>
    %34 = vector.shape_cast %33 : vector<8xf32> to vector<8x1xf32>
    %35 = vector.broadcast %34 : vector<8x1xf32> to vector<8x16xf32>
    %36 = arith.divf %32, %35 : vector<8x16xf32>
    %37 = arith.extf %0 : vector<8x16x128xbf16> to vector<8x16x128xf32>
    %38 = vector.shape_cast %36 : vector<8x16xf32> to vector<8x16x1xf32>
    %39 = vector.broadcast %38 : vector<8x16x1xf32> to vector<8x16x128xf32>
    %40 = arith.mulf %37, %39 : vector<8x16x128xf32>
    %cst_20 = arith.constant dense<0.000000e+00> : vector<8x128xf32>
    %41 = vector.multi_reduction <add>, %40, %cst_20 [1] : vector<8x16x128xf32> to vector<8x128xf32>
    %42 = arith.truncf %41 : vector<8x128xf32> to vector<8x128xbf16>
    %c0_21 = arith.constant 0 : index
    %c0_22 = arith.constant 0 : index
    %43 = vector.load %arg10[%c0_21, %c0_22] : memref<128x128xbf16, #tpu.memory_space<vmem>>, vector<128x128xbf16>
    %cst_23 = arith.constant dense<0.000000e+00> : vector<8x128xf32>
    %44 = tpu.matmul %42, %43, %cst_23 {dimension_numbers = #tpu.dot_dimension_numbers<[1], [0], [0], [1], [0, 0, 1, 1], [], []>} : vector<8x128xbf16>, vector<128x128xbf16>, vector<8x128xf32> -> vector<8x128xf32>
    %c0_24 = arith.constant 0 : index
    %c0_25 = arith.constant 0 : index
    %45 = vector.load %arg11[%c0_24, %c0_25] : memref<1x128xf32, #tpu.memory_space<vmem>>, vector<1x128xf32>
    %46 = vector.broadcast %45 : vector<1x128xf32> to vector<8x128xf32>
    %47 = arith.addf %44, %46 : vector<8x128xf32>
    %c0_26 = arith.constant 0 : index
    %c0_27 = arith.constant 0 : index
    %48 = vector.load %arg3[%c0_26, %c0_27] : memref<8x128xbf16, #tpu.memory_space<vmem>>, vector<8x128xbf16>
    %c0_28 = arith.constant 0 : index
    %c0_29 = arith.constant 0 : index
    %49 = vector.load %arg10[%c0_28, %c0_29] : memref<128x128xbf16, #tpu.memory_space<vmem>>, vector<128x128xbf16>
    %cst_30 = arith.constant dense<0.000000e+00> : vector<8x128xf32>
    %50 = tpu.matmul %48, %49, %cst_30 {dimension_numbers = #tpu.dot_dimension_numbers<[1], [0], [0], [1], [0, 0, 1, 1], [], []>} : vector<8x128xbf16>, vector<128x128xbf16>, vector<8x128xf32> -> vector<8x128xf32>
    %c0_31 = arith.constant 0 : index
    %c0_32 = arith.constant 0 : index
    %51 = vector.load %arg11[%c0_31, %c0_32] : memref<1x128xf32, #tpu.memory_space<vmem>>, vector<1x128xf32>
    %52 = vector.broadcast %51 : vector<1x128xf32> to vector<8x128xf32>
    %53 = arith.addf %50, %52 : vector<8x128xf32>
    %c0_33 = arith.constant 0 : index
    %c0_34 = arith.constant 0 : index
    %54 = vector.load %arg12[%c0_33, %c0_34] : memref<1x128xbf16, #tpu.memory_space<vmem>>, vector<1x128xbf16>
    %55 = arith.extf %54 : vector<1x128xbf16> to vector<1x128xf32>
    %56 = arith.addf %47, %14 : vector<8x128xf32>
    %57 = math.tanh %56 : vector<8x128xf32>
    %58 = vector.broadcast %55 : vector<1x128xf32> to vector<8x128xf32>
    %59 = arith.mulf %57, %58 : vector<8x128xf32>
    %cst_35 = arith.constant dense<0.000000e+00> : vector<8xf32>
    %60 = vector.multi_reduction <add>, %59, %cst_35 [1] : vector<8x128xf32> to vector<8xf32>
    %61 = vector.shape_cast %60 : vector<8xf32> to vector<8x1xf32>
    %c0_36 = arith.constant 0 : index
    %c0_37 = arith.constant 0 : index
    %62 = vector.load %arg13[%c0_36, %c0_37] : memref<1x1xf32, #tpu.memory_space<vmem>>, vector<1x1xf32>
    %63 = vector.broadcast %62 : vector<1x1xf32> to vector<8x1xf32>
    %64 = arith.addf %61, %63 : vector<8x1xf32>
    %65 = arith.addf %53, %14 : vector<8x128xf32>
    %66 = math.tanh %65 : vector<8x128xf32>
    %67 = vector.broadcast %55 : vector<1x128xf32> to vector<8x128xf32>
    %68 = arith.mulf %66, %67 : vector<8x128xf32>
    %cst_38 = arith.constant dense<0.000000e+00> : vector<8xf32>
    %69 = vector.multi_reduction <add>, %68, %cst_38 [1] : vector<8x128xf32> to vector<8xf32>
    %70 = vector.shape_cast %69 : vector<8xf32> to vector<8x1xf32>
    %c0_39 = arith.constant 0 : index
    %c0_40 = arith.constant 0 : index
    %71 = vector.load %arg13[%c0_39, %c0_40] : memref<1x1xf32, #tpu.memory_space<vmem>>, vector<1x1xf32>
    %72 = vector.broadcast %71 : vector<1x1xf32> to vector<8x1xf32>
    %73 = arith.addf %70, %72 : vector<8x1xf32>
    %74 = arith.maximumf %64, %73 : vector<8x1xf32>
    %75 = arith.subf %64, %74 : vector<8x1xf32>
    %76 = math.exp %75 : vector<8x1xf32>
    %77 = arith.subf %73, %74 : vector<8x1xf32>
    %78 = math.exp %77 : vector<8x1xf32>
    %79 = arith.addf %76, %78 : vector<8x1xf32>
    %80 = arith.divf %76, %79 : vector<8x1xf32>
    %81 = arith.divf %78, %79 : vector<8x1xf32>
    %c0_41 = arith.constant 0 : index
    %c0_42 = arith.constant 0 : index
    %82 = vector.load %arg3[%c0_41, %c0_42] : memref<8x128xbf16, #tpu.memory_space<vmem>>, vector<8x128xbf16>
    %83 = arith.extf %82 : vector<8x128xbf16> to vector<8x128xf32>
    %84 = vector.broadcast %80 : vector<8x1xf32> to vector<8x128xf32>
    %85 = arith.mulf %84, %41 : vector<8x128xf32>
    %86 = vector.broadcast %81 : vector<8x1xf32> to vector<8x128xf32>
    %87 = arith.mulf %86, %83 : vector<8x128xf32>
    %88 = arith.addf %85, %87 : vector<8x128xf32>
    %c0_43 = arith.constant 0 : index
    %c0_44 = arith.constant 0 : index
    %89 = vector.load %arg14[%c0_43, %c0_44] : memref<8x128xf32, #tpu.memory_space<vmem>>, vector<8x128xf32>
    tpu.vector_store %arg14[%c0_43, %c0_44], %88 {strides = array<i32>} : memref<8x128xf32, #tpu.memory_space<vmem>>, vector<8x128xf32>,
    %90 = tpu.iota {dimensions = array<i32: 1>} : vector<8x2xi32>
    %c0_i32 = arith.constant 0 : i32
    %91 = vector.broadcast %c0_i32 : i32 to vector<8x2xi32>
    %92 = arith.cmpi eq, %90, %91 : vector<8x2xi32>
    %93 = vector.shape_cast %80 : vector<8x1xf32> to vector<8x1xf32>
    %94 = vector.broadcast %93 : vector<8x1xf32> to vector<8x2xf32>
    %95 = vector.shape_cast %81 : vector<8x1xf32> to vector<8x1xf32>
    %96 = vector.broadcast %95 : vector<8x1xf32> to vector<8x2xf32>
    %97 = arith.select %92, %94, %96 : vector<8x2xi1>, vector<8x2xf32>
    %c0_45 = arith.constant 0 : index
    %c0_46 = arith.constant 0 : index
    %98 = vector.load %arg15[%c0_45, %c0_46] : memref<8x2xf32, #tpu.memory_space<vmem>>, vector<8x2xf32>
    tpu.vector_store %arg15[%c0_45, %c0_46], %97 {strides = array<i32>} : memref<8x2xf32, #tpu.memory_space<vmem>>, vector<8x2xf32>,
    return
  }
  func.func @transform_0(%arg0: i32) -> (i32, i32, i32) {
    %c0_i32 = arith.constant 0 : i32
    %c0_i32_0 = arith.constant 0 : i32
    %c0_i32_1 = arith.constant 0 : i32
    return %arg0, %c0_i32, %c0_i32_0 : i32, i32, i32
  }
  func.func @transform_1(%arg0: i32) -> (i32, i32) {
    %c0_i32 = arith.constant 0 : i32
    %c0_i32_0 = arith.constant 0 : i32
    return %arg0, %c0_i32 : i32, i32
  }
  func.func @transform_2(%arg0: i32) -> (i32, i32) {
    %c0_i32 = arith.constant 0 : i32
    %c0_i32_0 = arith.constant 0 : i32
    return %arg0, %c0_i32 : i32, i32
  }
  func.func @transform_3(%arg0: i32) -> (i32, i32) {
    %c0_i32 = arith.constant 0 : i32
    %c0_i32_0 = arith.constant 0 : i32
    %c0_i32_1 = arith.constant 0 : i32
    return %c0_i32, %c0_i32_0 : i32, i32
  }
  func.func @transform_4(%arg0: i32) -> (i32, i32) {
    %c0_i32 = arith.constant 0 : i32
    %c0_i32_0 = arith.constant 0 : i32
    %c0_i32_1 = arith.constant 0 : i32
    return %c0_i32, %c0_i32_0 : i32, i32
  }
  func.func @transform_5(%arg0: i32) -> (i32, i32) {
    %c0_i32 = arith.constant 0 : i32
    %c0_i32_0 = arith.constant 0 : i32
    %c0_i32_1 = arith.constant 0 : i32
    return %c0_i32, %c0_i32_0 : i32, i32
  }
  func.func @transform_6(%arg0: i32) -> (i32, i32) {
    %c0_i32 = arith.constant 0 : i32
    %c0_i32_0 = arith.constant 0 : i32
    %c0_i32_1 = arith.constant 0 : i32
    return %c0_i32, %c0_i32_0 : i32, i32
  }
  func.func @transform_7(%arg0: i32) -> (i32, i32) {
    %c0_i32 = arith.constant 0 : i32
    %c0_i32_0 = arith.constant 0 : i32
    %c0_i32_1 = arith.constant 0 : i32
    return %c0_i32, %c0_i32_0 : i32, i32
  }
  func.func @transform_8(%arg0: i32) -> (i32, i32) {
    %c0_i32 = arith.constant 0 : i32
    %c0_i32_0 = arith.constant 0 : i32
    %c0_i32_1 = arith.constant 0 : i32
    return %c0_i32, %c0_i32_0 : i32, i32
  }
  func.func @transform_9(%arg0: i32) -> (i32, i32) {
    %c0_i32 = arith.constant 0 : i32
    %c0_i32_0 = arith.constant 0 : i32
    %c0_i32_1 = arith.constant 0 : i32
    return %c0_i32, %c0_i32_0 : i32, i32
  }
  func.func @transform_10(%arg0: i32) -> (i32, i32) {
    %c0_i32 = arith.constant 0 : i32
    %c0_i32_0 = arith.constant 0 : i32
    %c0_i32_1 = arith.constant 0 : i32
    return %c0_i32, %c0_i32_0 : i32, i32
  }
  func.func @transform_11(%arg0: i32) -> (i32, i32) {
    %c0_i32 = arith.constant 0 : i32
    %c0_i32_0 = arith.constant 0 : i32
    %c0_i32_1 = arith.constant 0 : i32
    return %c0_i32, %c0_i32_0 : i32, i32
  }
  func.func @transform_12(%arg0: i32) -> (i32, i32) {
    %c0_i32 = arith.constant 0 : i32
    %c0_i32_0 = arith.constant 0 : i32
    %c0_i32_1 = arith.constant 0 : i32
    return %c0_i32, %c0_i32_0 : i32, i32
  }
  func.func @transform_13(%arg0: i32) -> (i32, i32) {
    %c0_i32 = arith.constant 0 : i32
    %c0_i32_0 = arith.constant 0 : i32
    return %arg0, %c0_i32 : i32, i32
  }
  func.func @transform_14(%arg0: i32) -> (i32, i32) {
    %c0_i32 = arith.constant 0 : i32
    %c0_i32_0 = arith.constant 0 : i32
    return %arg0, %c0_i32 : i32, i32
  }
}

</mosaic_0001>

<llo_original>
// kernel: tpu_custom_call.1
$region0: #{tpu_custom_call.1}
  #allocation0 [shape = 'u32[]', space=smem, size = 0x4, offset = 0x4, fixed_abs, tag = 'smem constant byte address 0x4 - core index']
  #allocation1 [shape = 'u32[144,128]{1,0:T(1,128)}', space=vmem, size = 0x12000, scoped, tag = 'internal scratch']
  #allocation2 [shape = 'f32[1,1]{1,0:T(1,128)S(1)}', space=vmem, size = 0x200, scoped, tag = 'scoped memory for tpu_custom_call.1']
  #allocation3 [shape = 'f32[1,1]{1,0:T(1,128)S(1)}', space=vmem, size = 0x200, scoped, tag = 'scoped memory for tpu_custom_call.1']
  %s0 = inlined_call_operand.hbm [shape: bf16[8,16,128], index: 0, kind: input, shape index: {}]
  %s1 = inlined_call_operand.vmem [shape: bf16[8,128], index: 1, kind: input, shape index: {}]
  %s2 = inlined_call_operand.vmem [shape: bf16[8,128], index: 2, kind: input, shape index: {}]
  %s3 = inlined_call_operand.hbm [shape: bf16[128,128], index: 3, kind: input, shape index: {}]
  %s4 = inlined_call_operand.vmem [shape: f32[1,128], index: 4, kind: input, shape index: {}]
  %s5 = inlined_call_operand.hbm [shape: bf16[128,128], index: 5, kind: input, shape index: {}]
  %s6 = inlined_call_operand.vmem [shape: f32[1,128], index: 6, kind: input, shape index: {}]
  %s7 = inlined_call_operand.vmem [shape: bf16[1,128], index: 7, kind: input, shape index: {}]
  %s8 = inlined_call_operand.<no memory space> [shape: f32[1,1], index: 8, kind: input, shape index: {}]
  %s9 = inlined_call_operand.hbm [shape: bf16[128,128], index: 9, kind: input, shape index: {}]
  %s10 = inlined_call_operand.vmem [shape: f32[1,128], index: 10, kind: input, shape index: {}]
  %s11 = inlined_call_operand.vmem [shape: bf16[1,128], index: 11, kind: input, shape index: {}]
  %s12 = inlined_call_operand.<no memory space> [shape: f32[1,1], index: 12, kind: input, shape index: {}]
  %s13 = inlined_call_operand.hbm [shape: f32[8,128], index: 13, kind: output, shape index: {0}]
  %s14 = inlined_call_operand.vmem [shape: f32[8,2], index: 14, kind: output, shape index: {1}]
  %15 = xla_tuple %s13, %s14
  %s16 = sld [smem:[#allocation0]]
  $region86: #{tpu_custom_call.1} parent=0
    _
  %s18 = ssub.s32 1, %s16
  %s19 = scalar_select 0, %s18, %s16
  %v20 = vstv %s8
  %21 = vst [vmem:[#allocation2] sm:$0x1] %v20
  %v22 = vstv %s12
  %23 = vst [vmem:[#allocation3] sm:$0x1] %v22
  $region1: #{tpu_custom_call.1} parent=0
    #allocation4 [shape = 'u8[32768]{0}', space=vmem, size = 0x8000, scoped, tag = 'input window, operand 0, single buffered']
    #allocation5 [shape = 's32[1]{0}', space=sflag, size = 0x4, scoped, tag = 'scoped memory for tpu_custom_call.1']
    #allocation6 [shape = 's32[1]{0}', space=sflag, size = 0x4, scoped, tag = 'scoped memory for tpu_custom_call.1']
    #allocation7 [shape = 'u8[32768]{0}', space=vmem, size = 0x8000, scoped, tag = 'input window, operand 3, single buffered']
    #allocation8 [shape = 's32[1]{0}', space=sflag, size = 0x4, scoped, tag = 'scoped memory for tpu_custom_call.1']
    #allocation9 [shape = 'u8[32768]{0}', space=vmem, size = 0x8000, scoped, tag = 'input window, operand 5, single buffered']
    #allocation10 [shape = 'u8[32768]{0}', space=vmem, size = 0x8000, scoped, tag = 'input window, operand 9, single buffered']
    #allocation11 [shape = 's32[1]{0}', space=sflag, size = 0x4, scoped, tag = 'scoped memory for tpu_custom_call.1']
    #allocation12 [shape = 'u8[4096]{0}', space=vmem, size = 0x1000, scoped, tag = 'output window, operand 0, single buffered']
    %24 = vsyncpa [#allocation5], 0
    %25 = vsyncpa [#allocation8], 0
    %26 = vsyncpa [#allocation11], 0
    %27 = vsyncpa [#allocation6], 0
    // Predicated region
    $region2: #{tpu_custom_call.1} parent=1 // pred_check
      _
    $region3: #{tpu_custom_call.1} parent=1 // pred_check_branch
      %29 = sbr.rel (0) target = $region5
    $region4: #{tpu_custom_call.1} parent=1 // pred_region
      %s31 = ssub.s32 1024, 1024
      %32 = vsyncadd [#allocation5], %s31
      %s33 = sshll.u32 [#allocation4], 4
      %s34 = int_to_ptr.vmem [resolvable:$true] %s33
      %39 = dma.hbm_to_vmem [thread:$0]  %s0, 1024, %s34, [#allocation5], 64, 64, 4
    $region5: #{tpu_custom_call.1} parent=1 // pred_fallthru
      _
    // Predicated region
    $region6: #{tpu_custom_call.1} parent=1 // pred_check
      _
    $region7: #{tpu_custom_call.1} parent=1 // pred_check_branch
      %41 = sbr.rel (0) target = $region9
    $region8: #{tpu_custom_call.1} parent=1 // pred_region
      _
    $region9: #{tpu_custom_call.1} parent=1 // pred_fallthru
      _
    // Predicated region
    $region10: #{tpu_custom_call.1} parent=1 // pred_check
      _
    $region11: #{tpu_custom_call.1} parent=1 // pred_check_branch
      %43 = sbr.rel (0) target = $region13
    $region12: #{tpu_custom_call.1} parent=1 // pred_region
      _
    $region13: #{tpu_custom_call.1} parent=1 // pred_fallthru
      _
    // Predicated region
    $region14: #{tpu_custom_call.1} parent=1 // pred_check
      _
    $region15: #{tpu_custom_call.1} parent=1 // pred_check_branch
      %45 = sbr.rel (0) target = $region17
    $region16: #{tpu_custom_call.1} parent=1 // pred_region
      %s47 = ssub.s32 1024, 1024
      %48 = vsyncadd [#allocation8], %s47
      %s49 = sshll.u32 [#allocation7], 4
      %s50 = int_to_ptr.vmem [resolvable:$true] %s49
      %55 = dma.hbm_to_vmem [thread:$0]  %s3, 1024, %s50, [#allocation8], 64, 64, 4
    $region17: #{tpu_custom_call.1} parent=1 // pred_fallthru
      _
    // Predicated region
    $region18: #{tpu_custom_call.1} parent=1 // pred_check
      _
    $region19: #{tpu_custom_call.1} parent=1 // pred_check_branch
      %57 = sbr.rel (0) target = $region21
    $region20: #{tpu_custom_call.1} parent=1 // pred_region
      _
    $region21: #{tpu_custom_call.1} parent=1 // pred_fallthru
      _
    // Predicated region
    $region22: #{tpu_custom_call.1} parent=1 // pred_check
      _
    $region23: #{tpu_custom_call.1} parent=1 // pred_check_branch
      %59 = sbr.rel (0) target = $region25
    $region24: #{tpu_custom_call.1} parent=1 // pred_region
      %s61 = ssub.s32 1024, 1024
      %62 = vsyncadd [#allocation8], %s61
      %s63 = sshll.u32 [#allocation9], 4
      %s64 = int_to_ptr.vmem [resolvable:$true] %s63
      %69 = dma.hbm_to_vmem [thread:$0]  %s5, 1024, %s64, [#allocation8], 64, 64, 4
    $region25: #{tpu_custom_call.1} parent=1 // pred_fallthru
      _
    // Predicated region
    $region26: #{tpu_custom_call.1} parent=1 // pred_check
      _
    $region27: #{tpu_custom_call.1} parent=1 // pred_check_branch
      %71 = sbr.rel (0) target = $region29
    $region28: #{tpu_custom_call.1} parent=1 // pred_region
      _
    $region29: #{tpu_custom_call.1} parent=1 // pred_fallthru
      _
    // Predicated region
    $region30: #{tpu_custom_call.1} parent=1 // pred_check
      _
    $region31: #{tpu_custom_call.1} parent=1 // pred_check_branch
      %73 = sbr.rel (0) target = $region33
    $region32: #{tpu_custom_call.1} parent=1 // pred_region
      _
    $region33: #{tpu_custom_call.1} parent=1 // pred_fallthru
      _
    // Predicated region
    $region34: #{tpu_custom_call.1} parent=1 // pred_check
      _
    $region35: #{tpu_custom_call.1} parent=1 // pred_check_branch
      %75 = sbr.rel (0) target = $region37
    $region36: #{tpu_custom_call.1} parent=1 // pred_region
      _
    $region37: #{tpu_custom_call.1} parent=1 // pred_fallthru
      _
    // Predicated region
    $region38: #{tpu_custom_call.1} parent=1 // pred_check
      _
    $region39: #{tpu_custom_call.1} parent=1 // pred_check_branch
      %77 = sbr.rel (0) target = $region41
    $region40: #{tpu_custom_call.1} parent=1 // pred_region
      %s79 = ssub.s32 1024, 1024
      %80 = vsyncadd [#allocation11], %s79
      %s81 = sshll.u32 [#allocation10], 4
      %s82 = int_to_ptr.vmem [resolvable:$true] %s81
      %87 = dma.hbm_to_vmem [thread:$0]  %s9, 1024, %s82, [#allocation11], 64, 64, 4
    $region41: #{tpu_custom_call.1} parent=1 // pred_fallthru
      _
    // Predicated region
    $region42: #{tpu_custom_call.1} parent=1 // pred_check
      _
    $region43: #{tpu_custom_call.1} parent=1 // pred_check_branch
      %89 = sbr.rel (0) target = $region45
    $region44: #{tpu_custom_call.1} parent=1 // pred_region
      _
    $region45: #{tpu_custom_call.1} parent=1 // pred_fallthru
      _
    // Predicated region
    $region46: #{tpu_custom_call.1} parent=1 // pred_check
      _
    $region47: #{tpu_custom_call.1} parent=1 // pred_check_branch
      %91 = sbr.rel (0) target = $region49
    $region48: #{tpu_custom_call.1} parent=1 // pred_region
      _
    $region49: #{tpu_custom_call.1} parent=1 // pred_fallthru
      _
    // Predicated region
    $region50: #{tpu_custom_call.1} parent=1 // pred_check
      _
    $region51: #{tpu_custom_call.1} parent=1 // pred_check_branch
      %93 = sbr.rel (0) target = $region53
    $region52: #{tpu_custom_call.1} parent=1 // pred_region
      _
    $region53: #{tpu_custom_call.1} parent=1 // pred_fallthru
      _
    // Predicated region
    $region54: #{tpu_custom_call.1} parent=1 // pred_check
      _
    $region55: #{tpu_custom_call.1} parent=1 // pred_check_branch
      %95 = sbr.rel (0) target = $region57
    $region56: #{tpu_custom_call.1} parent=1 // pred_region
      %96 = dma.done [#allocation5], 1024
    $region57: #{tpu_custom_call.1} parent=1 // pred_fallthru
      _
    // Predicated region
    $region58: #{tpu_custom_call.1} parent=1 // pred_check
      _
    $region59: #{tpu_custom_call.1} parent=1 // pred_check_branch
      %98 = sbr.rel (0) target = $region61
    $region60: #{tpu_custom_call.1} parent=1 // pred_region
      %99 = dma.done [#allocation8], 1024
    $region61: #{tpu_custom_call.1} parent=1 // pred_fallthru
      _
    // Predicated region
    $region62: #{tpu_custom_call.1} parent=1 // pred_check
      _
    $region63: #{tpu_custom_call.1} parent=1 // pred_check_branch
      %101 = sbr.rel (0) target = $region65
    $region64: #{tpu_custom_call.1} parent=1 // pred_region
      %102 = dma.done [#allocation8], 1024
    $region65: #{tpu_custom_call.1} parent=1 // pred_fallthru
      _
    // Predicated region
    $region66: #{tpu_custom_call.1} parent=1 // pred_check
      _
    $region67: #{tpu_custom_call.1} parent=1 // pred_check_branch
      %104 = sbr.rel (0) target = $region69
    $region68: #{tpu_custom_call.1} parent=1 // pred_region
      %105 = dma.done [#allocation11], 1024
    $region69: #{tpu_custom_call.1} parent=1 // pred_fallthru
      _
    %v107 = vld [vmem:[#allocation4] sm:$0xf]
    %v108 = vld [vmem:[#allocation4 + $0x4] sm:$0xf]
    %v109 = vld [vmem:[#allocation4 + $0x8] sm:$0xf]
    %v110 = vld [vmem:[#allocation4 + $0xc] sm:$0xf]
    %v111 = vld [vmem:[#allocation4 + $0x10] sm:$0xf]
    %v112 = vld [vmem:[#allocation4 + $0x14] sm:$0xf]
    %v113 = vld [vmem:[#allocation4 + $0x18] sm:$0xf]
    %v114 = vld [vmem:[#allocation4 + $0x1c] sm:$0xf]
    %v115 = vld [vmem:[#allocation4 + $0x20] sm:$0xf]
    %v116 = vld [vmem:[#allocation4 + $0x24] sm:$0xf]
    %v117 = vld [vmem:[#allocation4 + $0x28] sm:$0xf]
    %v118 = vld [vmem:[#allocation4 + $0x2c] sm:$0xf]
    %v119 = vld [vmem:[#allocation4 + $0x30] sm:$0xf]
    %v120 = vld [vmem:[#allocation4 + $0x34] sm:$0xf]
    %v121 = vld [vmem:[#allocation4 + $0x38] sm:$0xf]
    %v122 = vld [vmem:[#allocation4 + $0x3c] sm:$0xf]
    %v123 = vld [vmem:[#allocation7] sm:$0xf]
    %v124 = vld [vmem:[#allocation7 + $0x4] sm:$0xf]
    %v125 = vld [vmem:[#allocation7 + $0x8] sm:$0xf]
    %v126 = vld [vmem:[#allocation7 + $0xc] sm:$0xf]
    %v127 = vld [vmem:[#allocation7 + $0x10] sm:$0xf]
    %v128 = vld [vmem:[#allocation7 + $0x14] sm:$0xf]
    %v129 = vld [vmem:[#allocation7 + $0x18] sm:$0xf]
    %v130 = vld [vmem:[#allocation7 + $0x1c] sm:$0xf]
    %v131 = vld [vmem:[#allocation7 + $0x20] sm:$0xf]
    %v132 = vld [vmem:[#allocation7 + $0x24] sm:$0xf]
    %v133 = vld [vmem:[#allocation7 + $0x28] sm:$0xf]
    %v134 = vld [vmem:[#allocation7 + $0x2c] sm:$0xf]
    %v135 = vld [vmem:[#allocation7 + $0x30] sm:$0xf]
    %v136 = vld [vmem:[#allocation7 + $0x34] sm:$0xf]
    %v137 = vld [vmem:[#allocation7 + $0x38] sm:$0xf]
    %v138 = vld [vmem:[#allocation7 + $0x3c] sm:$0xf]
    %v155 = vunpack.c.l.b16 %v107
    %v156 = vunpack.c.l.b16 %v108
    %v157 = vunpack.c.l.b16 %v109
    %v158 = vunpack.c.l.b16 %v110
    %v159 = vunpack.c.l.b16 %v111
    %v160 = vunpack.c.l.b16 %v112
    %v161 = vunpack.c.l.b16 %v113
    %v162 = vunpack.c.l.b16 %v114
    %v163 = vunpack.c.l.b16 %v115
    %v164 = vunpack.c.l.b16 %v116
    %v165 = vunpack.c.l.b16 %v117
    %v166 = vunpack.c.l.b16 %v118
    %v167 = vunpack.c.l.b16 %v119
    %v168 = vunpack.c.l.b16 %v120
    %v169 = vunpack.c.l.b16 %v121
    %v170 = vunpack.c.l.b16 %v122
    %v171 = vpack.c.b16 %v156, %v155
    %v172 = vpack.c.b16 %v158, %v157
    %v173 = vpack.c.b16 %v160, %v159
    %v174 = vpack.c.b16 %v162, %v161
    %v175 = vpack.c.b16 %v164, %v163
    %v176 = vpack.c.b16 %v166, %v165
    %v177 = vpack.c.b16 %v168, %v167
    %v178 = vpack.c.b16 %v170, %v169
    %v203 = vunpack.c.l.b16 %v123
    %v204 = vunpack.c.l.b16 %v124
    %v205 = vunpack.c.l.b16 %v125
    %v206 = vunpack.c.l.b16 %v126
    %v207 = vunpack.c.l.b16 %v127
    %v208 = vunpack.c.l.b16 %v128
    %v209 = vunpack.c.l.b16 %v129
    %v210 = vunpack.c.l.b16 %v130
    %v211 = vunpack.c.l.b16 %v131
    %v212 = vunpack.c.l.b16 %v132
    %v213 = vunpack.c.l.b16 %v133
    %v214 = vunpack.c.l.b16 %v134
    %v215 = vunpack.c.l.b16 %v135
    %v216 = vunpack.c.l.b16 %v136
    %v217 = vunpack.c.l.b16 %v137
    %v218 = vunpack.c.l.b16 %v138
    %v219 = vpack.c.b16 %v204, %v203
    %v220 = vpack.c.b16 %v206, %v205
    %v221 = vpack.c.b16 %v208, %v207
    %v222 = vpack.c.b16 %v210, %v209
    %v223 = vpack.c.b16 %v212, %v211
    %v224 = vpack.c.b16 %v214, %v213
    %v225 = vpack.c.b16 %v216, %v215
    %v226 = vpack.c.b16 %v218, %v217
    %235 = vmatprep.subr.bf16.mxu0 0
    %236 = vmatpush1.bf16.msra.mxu0 %v219
    %237 = vmatprep.subr.bf16.mxu0 0
    %238 = vmatpush1.bf16.msra.mxu0 %v220
    %239 = vmatprep.subr.bf16.mxu0 0
    %240 = vmatpush1.bf16.msra.mxu0 %v221
    %241 = vmatprep.subr.bf16.mxu0 0
    %242 = vmatpush1.bf16.msra.mxu0 %v222
    %243 = vmatprep.subr.bf16.mxu0 0
    %244 = vmatpush1.bf16.msra.mxu0 %v223
    %245 = vmatprep.subr.bf16.mxu0 0
    %246 = vmatpush1.bf16.msra.mxu0 %v224
    %247 = vmatprep.subr.bf16.mxu0 0
    %248 = vmatpush1.bf16.msra.mxu0 %v225
    %249 = vmatprep.subr.bf16.mxu0 0
    %250 = vmatpush1.bf16.msra.mxu0 %v226
    %251 = vmatprep.subr.bf16.mxu0 0
    %252 = vmatpush1.bf16.msra.mxu0 0
    %253 = vmatprep.subr.bf16.mxu0 0
    %254 = vmatpush1.bf16.msra.mxu0 0
    %255 = vmatprep.subr.bf16.mxu0 0
    %256 = vmatpush1.bf16.msra.mxu0 0
    %257 = vmatprep.subr.bf16.mxu0 0
    %258 = vmatpush1.bf16.msra.mxu0 0
    %259 = vmatprep.subr.bf16.mxu0 0
    %260 = vmatpush1.bf16.msra.mxu0 0
    %261 = vmatprep.subr.bf16.mxu0 0
    %262 = vmatpush1.bf16.msra.mxu0 0
    %263 = vmatprep.subr.bf16.mxu0 0
    %264 = vmatpush1.bf16.msra.mxu0 0
    %265 = vmatprep.subr.bf16.mxu0 0
    %266 = vmatpush1.bf16.msra.mxu0 0
    %267 = vmatprep.mubr.bf16.mxu0 0
    %268 = vmatmul.mubr.bf16.gmra.mrb[0].mxu0 %v171
    %v269 = vpop.f32.mrb[0].mxu0
    %v270 = vadd.f32 0.0, %v269
    %v271 = vpop.f32.mrb[0].mxu0
    %v272 = vpop.f32.mrb[0].mxu0
    %v273 = vadd.f32 0.0, %v272
    %v274 = vpop.f32.mrb[0].mxu0
    %275 = vmatprep.mubr.bf16.mxu0 0
    %276 = vmatmul.mubr.bf16.gmra.mrb[0].mxu0 %v172
    %v277 = vpop.f32.mrb[0].mxu0
    %v278 = vadd.f32 0.0, %v277
    %v279 = vpop.f32.mrb[0].mxu0
    %v280 = vpop.f32.mrb[0].mxu0
    %v281 = vadd.f32 0.0, %v280
    %v282 = vpop.f32.mrb[0].mxu0
    %283 = vmatprep.mubr.bf16.mxu0 0
    %284 = vmatmul.mubr.bf16.gmra.mrb[0].mxu0 %v173
    %v285 = vpop.f32.mrb[0].mxu0
    %v286 = vadd.f32 0.0, %v285
    %v287 = vpop.f32.mrb[0].mxu0
    %v288 = vpop.f32.mrb[0].mxu0
    %v289 = vadd.f32 0.0, %v288
    %v290 = vpop.f32.mrb[0].mxu0
    %291 = vmatprep.mubr.bf16.mxu0 0
    %292 = vmatmul.mubr.bf16.gmra.mrb[0].mxu0 %v174
    %v293 = vpop.f32.mrb[0].mxu0
    %v294 = vadd.f32 0.0, %v293
    %v295 = vpop.f32.mrb[0].mxu0
    %v296 = vpop.f32.mrb[0].mxu0
    %v297 = vadd.f32 0.0, %v296
    %v298 = vpop.f32.mrb[0].mxu0
    %299 = vmatprep.mubr.bf16.mxu0 0
    %300 = vmatmul.mubr.bf16.gmra.mrb[0].mxu0 %v175
    %v301 = vpop.f32.mrb[0].mxu0
    %v302 = vadd.f32 0.0, %v301
    %v303 = vpop.f32.mrb[0].mxu0
    %v304 = vpop.f32.mrb[0].mxu0
    %v305 = vadd.f32 0.0, %v304
    %v306 = vpop.f32.mrb[0].mxu0
    %307 = vmatprep.mubr.bf16.mxu0 0
    %308 = vmatmul.mubr.bf16.gmra.mrb[0].mxu0 %v176
    %v309 = vpop.f32.mrb[0].mxu0
    %v310 = vadd.f32 0.0, %v309
    %v311 = vpop.f32.mrb[0].mxu0
    %v312 = vpop.f32.mrb[0].mxu0
    %v313 = vadd.f32 0.0, %v312
    %v314 = vpop.f32.mrb[0].mxu0
    %315 = vmatprep.mubr.bf16.mxu0 0
    %316 = vmatmul.mubr.bf16.gmra.mrb[0].mxu0 %v177
    %v317 = vpop.f32.mrb[0].mxu0
    %v318 = vadd.f32 0.0, %v317
    %v319 = vpop.f32.mrb[0].mxu0
    %v320 = vpop.f32.mrb[0].mxu0
    %v321 = vadd.f32 0.0, %v320
    %v322 = vpop.f32.mrb[0].mxu0
    %323 = vmatprep.mubr.bf16.mxu0 0
    %324 = vmatmul.mubr.bf16.gmra.mrb[0].mxu0 %v178
    %v325 = vpop.f32.mrb[0].mxu0
    %v326 = vadd.f32 0.0, %v325
    %v327 = vpop.f32.mrb[0].mxu0
    %v328 = vpop.f32.mrb[0].mxu0
    %v329 = vadd.f32 0.0, %v328
    %v330 = vpop.f32.mrb[0].mxu0
    %331 = vdwg.mxu0
    %v332 = vld [vmem:[%s4] sm:$0x1]
    %v334 = vlaneseq
    %v335 = vshrl.u32 %v334, 7
    %v336 = vsub.s32 0, %v335
    %v337 = vrot.slane %v332, %v336
    %v339 = vadd.f32 %v270, %v337
    %v340 = vadd.f32 %v273, %v337
    %v341 = vadd.f32 %v278, %v337
    %v342 = vadd.f32 %v281, %v337
    %v343 = vadd.f32 %v286, %v337
    %v344 = vadd.f32 %v289, %v337
    %v345 = vadd.f32 %v294, %v337
    %v346 = vadd.f32 %v297, %v337
    %v347 = vadd.f32 %v302, %v337
    %v348 = vadd.f32 %v305, %v337
    %v349 = vadd.f32 %v310, %v337
    %v350 = vadd.f32 %v313, %v337
    %v351 = vadd.f32 %v318, %v337
    %v352 = vadd.f32 %v321, %v337
    %v353 = vadd.f32 %v326, %v337
    %v354 = vadd.f32 %v329, %v337
    %v355 = vld [vmem:[%s1] sm:$0xf]
    %v356 = vld [vmem:[#allocation9] sm:$0xf]
    %v357 = vld [vmem:[#allocation9 + $0x4] sm:$0xf]
    %v358 = vld [vmem:[#allocation9 + $0x8] sm:$0xf]
    %v359 = vld [vmem:[#allocation9 + $0xc] sm:$0xf]
    %v360 = vld [vmem:[#allocation9 + $0x10] sm:$0xf]
    %v361 = vld [vmem:[#allocation9 + $0x14] sm:$0xf]
    %v362 = vld [vmem:[#allocation9 + $0x18] sm:$0xf]
    %v363 = vld [vmem:[#allocation9 + $0x1c] sm:$0xf]
    %v364 = vld [vmem:[#allocation9 + $0x20] sm:$0xf]
    %v365 = vld [vmem:[#allocation9 + $0x24] sm:$0xf]
    %v366 = vld [vmem:[#allocation9 + $0x28] sm:$0xf]
    %v367 = vld [vmem:[#allocation9 + $0x2c] sm:$0xf]
    %v368 = vld [vmem:[#allocation9 + $0x30] sm:$0xf]
    %v369 = vld [vmem:[#allocation9 + $0x34] sm:$0xf]
    %v370 = vld [vmem:[#allocation9 + $0x38] sm:$0xf]
    %v371 = vld [vmem:[#allocation9 + $0x3c] sm:$0xf]
    %v372 = vld [vmem:[%s6] sm:$0x1]
    %v374 = vlaneseq
    %v375 = vshrl.u32 %v374, 7
    %v376 = vsub.s32 0, %v375
    %v377 = vrot.slane %v372, %v376
    %v395 = vunpack.c.l.b16 %v356
    %v396 = vunpack.c.l.b16 %v357
    %v397 = vunpack.c.l.b16 %v358
    %v398 = vunpack.c.l.b16 %v359
    %v399 = vunpack.c.l.b16 %v360
    %v400 = vunpack.c.l.b16 %v361
    %v401 = vunpack.c.l.b16 %v362
    %v402 = vunpack.c.l.b16 %v363
    %v403 = vunpack.c.l.b16 %v364
    %v404 = vunpack.c.l.b16 %v365
    %v405 = vunpack.c.l.b16 %v366
    %v406 = vunpack.c.l.b16 %v367
    %v407 = vunpack.c.l.b16 %v368
    %v408 = vunpack.c.l.b16 %v369
    %v409 = vunpack.c.l.b16 %v370
    %v410 = vunpack.c.l.b16 %v371
    %v411 = vpack.c.b16 %v396, %v395
    %v412 = vpack.c.b16 %v398, %v397
    %v413 = vpack.c.b16 %v400, %v399
    %v414 = vpack.c.b16 %v402, %v401
    %v415 = vpack.c.b16 %v404, %v403
    %v416 = vpack.c.b16 %v406, %v405
    %v417 = vpack.c.b16 %v408, %v407
    %v418 = vpack.c.b16 %v410, %v409
    %427 = vmatprep.subr.bf16.mxu0 0
    %428 = vmatpush1.bf16.msra.mxu0 %v411
    %429 = vmatprep.subr.bf16.mxu0 0
    %430 = vmatpush1.bf16.msra.mxu0 %v412
    %431 = vmatprep.subr.bf16.mxu0 0
    %432 = vmatpush1.bf16.msra.mxu0 %v413
    %433 = vmatprep.subr.bf16.mxu0 0
    %434 = vmatpush1.bf16.msra.mxu0 %v414
    %435 = vmatprep.subr.bf16.mxu0 0
    %436 = vmatpush1.bf16.msra.mxu0 %v415
    %437 = vmatprep.subr.bf16.mxu0 0
    %438 = vmatpush1.bf16.msra.mxu0 %v416
    %439 = vmatprep.subr.bf16.mxu0 0
    %440 = vmatpush1.bf16.msra.mxu0 %v417
    %441 = vmatprep.subr.bf16.mxu0 0
    %442 = vmatpush1.bf16.msra.mxu0 %v418
    %443 = vmatprep.subr.bf16.mxu0 0
    %444 = vmatpush1.bf16.msra.mxu0 0
    %445 = vmatprep.subr.bf16.mxu0 0
    %446 = vmatpush1.bf16.msra.mxu0 0
    %447 = vmatprep.subr.bf16.mxu0 0
    %448 = vmatpush1.bf16.msra.mxu0 0
    %449 = vmatprep.subr.bf16.mxu0 0
    %450 = vmatpush1.bf16.msra.mxu0 0
    %451 = vmatprep.subr.bf16.mxu0 0
    %452 = vmatpush1.bf16.msra.mxu0 0
    %453 = vmatprep.subr.bf16.mxu0 0
    %454 = vmatpush1.bf16.msra.mxu0 0
    %455 = vmatprep.subr.bf16.mxu0 0
    %456 = vmatpush1.bf16.msra.mxu0 0
    %457 = vmatprep.subr.bf16.mxu0 0
    %458 = vmatpush1.bf16.msra.mxu0 0
    %459 = vmatprep.mubr.bf16.mxu0 0
    %460 = vmatmul.mubr.bf16.gmra.mrb[0].mxu0 %v355
    %v461 = vpop.f32.mrb[0].mxu0
    %v462 = vadd.f32 %v377, %v461
    %v463 = vpop.f32.mrb[0].mxu0
    %v464 = vpop.f32.mrb[0].mxu0
    %v465 = vpop.f32.mrb[0].mxu0
    %466 = vdwg.mxu0
    %v468 = vcombine.high %v462, %v462
    %v470 = vunpack.c.l.s4 1966171168
    %v471 = vunpack.c.0.s8 %v470
    %v472 = vlaneseq
    %v473 = vshrl.u32 %v472, 7
    %v474 = vsub.s32 %v471, %v473
    %v475 = vrot.slane %v462, %v474
    %v477 = vunpack.c.l.s4 1966171168
    %v478 = vunpack.c.0.s8 %v477
    %v479 = vlaneseq
    %v480 = vshrl.u32 %v479, 7
    %v481 = vsub.s32 %v478, %v480
    %v482 = vrot.slane %v468, %v481
    %v483 = vcombine.high %v475, %v475
    %v484 = vcombine.high %v482, %v482
    %v486 = vunpack.c.l.s4 1966171168
    %v487 = vunpack.c.0.s8 %v486
    %v488 = vlaneseq
    %v489 = vshrl.u32 %v488, 7
    %v490 = vsub.s32 %v487, %v489
    %v491 = vrot.slane %v475, %v490
    %v493 = vunpack.c.l.s4 1966171168
    %v494 = vunpack.c.0.s8 %v493
    %v495 = vlaneseq
    %v496 = vshrl.u32 %v495, 7
    %v497 = vsub.s32 %v494, %v496
    %v498 = vrot.slane %v482, %v497
    %v500 = vunpack.c.l.s4 1966171168
    %v501 = vunpack.c.0.s8 %v500
    %v502 = vlaneseq
    %v503 = vshrl.u32 %v502, 7
    %v504 = vsub.s32 %v501, %v503
    %v505 = vrot.slane %v483, %v504
    %v507 = vunpack.c.l.s4 1966171168
    %v508 = vunpack.c.0.s8 %v507
    %v509 = vlaneseq
    %v510 = vshrl.u32 %v509, 7
    %v511 = vsub.s32 %v508, %v510
    %v512 = vrot.slane %v484, %v511
    %v513 = vcombine.high %v491, %v491
    %v514 = vcombine.high %v498, %v498
    %v515 = vcombine.high %v505, %v505
    %v516 = vcombine.high %v512, %v512
    %v517 = vlaneseq
    %v518 = vshrl.u32 %v517, 7
    %v519 = vsub.s32 0, %v518
    %v520 = vrot.slane %v491, %v519
    %v521 = vlaneseq
    %v522 = vshrl.u32 %v521, 7
    %v523 = vsub.s32 0, %v522
    %v524 = vrot.slane %v505, %v523
    %v525 = vlaneseq
    %v526 = vshrl.u32 %v525, 7
    %v527 = vsub.s32 0, %v526
    %v528 = vrot.slane %v513, %v527
    %v529 = vlaneseq
    %v530 = vshrl.u32 %v529, 7
    %v531 = vsub.s32 0, %v530
    %v532 = vrot.slane %v515, %v531
    %v533 = vlaneseq
    %v534 = vshrl.u32 %v533, 7
    %v535 = vsub.s32 0, %v534
    %v536 = vrot.slane %v498, %v535
    %v537 = vlaneseq
    %v538 = vshrl.u32 %v537, 7
    %v539 = vsub.s32 0, %v538
    %v540 = vrot.slane %v512, %v539
    %v541 = vlaneseq
    %v542 = vshrl.u32 %v541, 7
    %v543 = vsub.s32 0, %v542
    %v544 = vrot.slane %v514, %v543
    %v545 = vlaneseq
    %v546 = vshrl.u32 %v545, 7
    %v547 = vsub.s32 0, %v546
    %v548 = vrot.slane %v516, %v547
    %v557 = vadd.f32 %v339, %v520
    %v558 = vadd.f32 %v340, %v520
    %v559 = vadd.f32 %v341, %v524
    %v560 = vadd.f32 %v342, %v524
    %v561 = vadd.f32 %v343, %v528
    %v562 = vadd.f32 %v344, %v528
    %v563 = vadd.f32 %v345, %v532
    %v564 = vadd.f32 %v346, %v532
    %v565 = vadd.f32 %v347, %v536
    %v566 = vadd.f32 %v348, %v536
    %v567 = vadd.f32 %v349, %v540
    %v568 = vadd.f32 %v350, %v540
    %v569 = vadd.f32 %v351, %v544
    %v570 = vadd.f32 %v352, %v544
    %v571 = vadd.f32 %v353, %v548
    %v572 = vadd.f32 %v354, %v548
    %v573 = vtanh.pop %v557
    %v574 = vtanh.pop %v558
    %v575 = vtanh.pop %v559
    %v576 = vtanh.pop %v560
    %v577 = vtanh.pop %v561
    %v578 = vtanh.pop %v562
    %v579 = vtanh.pop %v563
    %v580 = vtanh.pop %v564
    %v581 = vtanh.pop %v565
    %v582 = vtanh.pop %v566
    %v583 = vtanh.pop %v567
    %v584 = vtanh.pop %v568
    %v585 = vtanh.pop %v569
    %v586 = vtanh.pop %v570
    %v587 = vtanh.pop %v571
    %v588 = vtanh.pop %v572
    %v589 = vld [vmem:[%s7] sm:$0x1]
    %v590 = vunpack.c.l.bf16 %v589
    %v591 = vlaneseq
    %v592 = vshrl.u32 %v591, 7
    %v593 = vsub.s32 0, %v592
    %v594 = vrot.slane %v590, %v593
    %v595 = vmul.f32 %v573, %v594
    %v596 = vmul.f32 %v574, %v594
    %v597 = vmul.f32 %v575, %v594
    %v598 = vmul.f32 %v576, %v594
    %v599 = vmul.f32 %v577, %v594
    %v600 = vmul.f32 %v578, %v594
    %v601 = vmul.f32 %v579, %v594
    %v602 = vmul.f32 %v580, %v594
    %v603 = vmul.f32 %v581, %v594
    %v604 = vmul.f32 %v582, %v594
    %v605 = vmul.f32 %v583, %v594
    %v606 = vmul.f32 %v584, %v594
    %v607 = vmul.f32 %v585, %v594
    %v608 = vmul.f32 %v586, %v594
    %v609 = vmul.f32 %v587, %v594
    %v610 = vmul.f32 %v588, %v594
    %611 = vadd.xlane.f32.xlu0 %v595
    %v612 = vpop.xlane.xlu0 %611
    %613 = vadd.xlane.f32.xlu0 %v596
    %v614 = vpop.xlane.xlu0 %613
    %615 = vadd.xlane.f32.xlu0 %v597
    %v616 = vpop.xlane.xlu0 %615
    %617 = vadd.xlane.f32.xlu0 %v598
    %v618 = vpop.xlane.xlu0 %617
    %619 = vadd.xlane.f32.xlu0 %v599
    %v620 = vpop.xlane.xlu0 %619
    %621 = vadd.xlane.f32.xlu0 %v600
    %v622 = vpop.xlane.xlu0 %621
    %623 = vadd.xlane.f32.xlu0 %v601
    %v624 = vpop.xlane.xlu0 %623
    %625 = vadd.xlane.f32.xlu0 %v602
    %v626 = vpop.xlane.xlu0 %625
    %627 = vadd.xlane.f32.xlu0 %v603
    %v628 = vpop.xlane.xlu0 %627
    %629 = vadd.xlane.f32.xlu0 %v604
    %v630 = vpop.xlane.xlu0 %629
    %631 = vadd.xlane.f32.xlu0 %v605
    %v632 = vpop.xlane.xlu0 %631
    %633 = vadd.xlane.f32.xlu0 %v606
    %v634 = vpop.xlane.xlu0 %633
    %635 = vadd.xlane.f32.xlu0 %v607
    %v636 = vpop.xlane.xlu0 %635
    %637 = vadd.xlane.f32.xlu0 %v608
    %v638 = vpop.xlane.xlu0 %637
    %639 = vadd.xlane.f32.xlu0 %v609
    %v640 = vpop.xlane.xlu0 %639
    %641 = vadd.xlane.f32.xlu0 %v610
    %v642 = vpop.xlane.xlu0 %641
    %v643 = vld [vmem:[#allocation2] sm:$0x1]
    %v645 = vlaneseq
    %v646 = vshrl.u32 %v645, 7
    %v647 = vsub.s32 0, %v646
    %v648 = vrot.slane %v643, %v647
    %649 = vset.pattern.permute.xlu0 0
    %650 = vperm.xlu0 %649, %v648
    %v651 = vpop.permute.xlu0 %650
    %v653 = vadd.f32 %v612, %v651
    %v654 = vadd.f32 %v614, %v651
    %v655 = vadd.f32 %v616, %v651
    %v656 = vadd.f32 %v618, %v651
    %v657 = vadd.f32 %v620, %v651
    %v658 = vadd.f32 %v622, %v651
    %v659 = vadd.f32 %v624, %v651
    %v660 = vadd.f32 %v626, %v651
    %v661 = vadd.f32 %v628, %v651
    %v662 = vadd.f32 %v630, %v651
    %v663 = vadd.f32 %v632, %v651
    %v664 = vadd.f32 %v634, %v651
    %v665 = vadd.f32 %v636, %v651
    %v666 = vadd.f32 %v638, %v651
    %v667 = vadd.f32 %v640, %v651
    %v668 = vadd.f32 %v642, %v651
    %v685 = vlaneseq
    %v686 = vand.u32 %v685, 127
    %v687 = vlaneseq
    %v688 = vshrl.u32 %v687, 7
    %v689 = vsub.s32 %v686, %v688
    %v690 = vrot.slane %v653, %v689
    %v691 = vadd.s32 %v686, 4294967288
    %v692 = vlaneseq
    %v693 = vshrl.u32 %v692, 7
    %v694 = vsub.s32 %v691, %v693
    %v695 = vrot.slane %v654, %v694
    %vm696 = vcmask 130112
    %v697 = vsel %vm696, %v695, %v690
    %v698 = vlaneseq
    %v699 = vshrl.u32 %v698, 7
    %v700 = vsub.s32 %v686, %v699
    %v701 = vrot.slane %v655, %v700
    %v702 = vlaneseq
    %v703 = vshrl.u32 %v702, 7
    %v704 = vsub.s32 %v691, %v703
    %v705 = vrot.slane %v656, %v704
    %v706 = vsel %vm696, %v705, %v701
    %v707 = vlaneseq
    %v708 = vshrl.u32 %v707, 7
    %v709 = vsub.s32 %v686, %v708
    %v710 = vrot.slane %v657, %v709
    %v711 = vlaneseq
    %v712 = vshrl.u32 %v711, 7
    %v713 = vsub.s32 %v691, %v712
    %v714 = vrot.slane %v658, %v713
    %v715 = vsel %vm696, %v714, %v710
    %v716 = vlaneseq
    %v717 = vshrl.u32 %v716, 7
    %v718 = vsub.s32 %v686, %v717
    %v719 = vrot.slane %v659, %v718
    %v720 = vlaneseq
    %v721 = vshrl.u32 %v720, 7
    %v722 = vsub.s32 %v691, %v721
    %v723 = vrot.slane %v660, %v722
    %v724 = vsel %vm696, %v723, %v719
    %v725 = vlaneseq
    %v726 = vshrl.u32 %v725, 7
    %v727 = vsub.s32 %v686, %v726
    %v728 = vrot.slane %v661, %v727
    %v729 = vlaneseq
    %v730 = vshrl.u32 %v729, 7
    %v731 = vsub.s32 %v691, %v730
    %v732 = vrot.slane %v662, %v731
    %v733 = vsel %vm696, %v732, %v728
    %v734 = vlaneseq
    %v735 = vshrl.u32 %v734, 7
    %v736 = vsub.s32 %v686, %v735
    %v737 = vrot.slane %v663, %v736
    %v738 = vlaneseq
    %v739 = vshrl.u32 %v738, 7
    %v740 = vsub.s32 %v691, %v739
    %v741 = vrot.slane %v664, %v740
    %v742 = vsel %vm696, %v741, %v737
    %v743 = vlaneseq
    %v744 = vshrl.u32 %v743, 7
    %v745 = vsub.s32 %v686, %v744
    %v746 = vrot.slane %v665, %v745
    %v747 = vlaneseq
    %v748 = vshrl.u32 %v747, 7
    %v749 = vsub.s32 %v691, %v748
    %v750 = vrot.slane %v666, %v749
    %v751 = vsel %vm696, %v750, %v746
    %v752 = vlaneseq
    %v753 = vshrl.u32 %v752, 7
    %v754 = vsub.s32 %v686, %v753
    %v755 = vrot.slane %v667, %v754
    %v756 = vlaneseq
    %v757 = vshrl.u32 %v756, 7
    %v758 = vsub.s32 %v691, %v757
    %v759 = vrot.slane %v668, %v758
    %v760 = vsel %vm696, %v759, %v755
    %vm761 = vcmask 1041409
    %v762 = vsel %vm761, %v706, %v697
    %vm763 = vcmask 1042434
    %v764 = vsel %vm763, %v715, %v762
    %vm765 = vcmask 1043459
    %v766 = vsel %vm765, %v724, %v764
    %vm767 = vcmask 1044484
    %v768 = vsel %vm767, %v733, %v766
    %vm769 = vcmask 1045509
    %v770 = vsel %vm769, %v742, %v768
    %vm771 = vcmask 1046534
    %v772 = vsel %vm771, %v751, %v770
    %vm773 = vcmask 1047559
    %v774 = vsel %vm773, %v760, %v772
    %vm776 = vcmask 130048
    %v777 = vsel %vm776, %v774, -inf
    %778 = vmax.xlane.f32.xlu0 %v777
    %v779 = vpop.xlane.xlu0 %778
    %v781 = vlaneseq
    %v782 = vshrl.u32 %v781, 7
    %v783 = vsub.s32 0, %v782
    %v784 = vrot.slane %v779, %v783
    %v785 = vlaneseq
    %v786 = vshrl.u32 %v785, 7
    %v787 = vsub.s32 1, %v786
    %v788 = vrot.slane %v779, %v787
    %v789 = vlaneseq
    %v790 = vshrl.u32 %v789, 7
    %v791 = vsub.s32 2, %v790
    %v792 = vrot.slane %v779, %v791
    %v793 = vlaneseq
    %v794 = vshrl.u32 %v793, 7
    %v795 = vsub.s32 3, %v794
    %v796 = vrot.slane %v779, %v795
    %v797 = vlaneseq
    %v798 = vshrl.u32 %v797, 7
    %v799 = vsub.s32 4, %v798
    %v800 = vrot.slane %v779, %v799
    %v801 = vlaneseq
    %v802 = vshrl.u32 %v801, 7
    %v803 = vsub.s32 5, %v802
    %v804 = vrot.slane %v779, %v803
    %v805 = vlaneseq
    %v806 = vshrl.u32 %v805, 7
    %v807 = vsub.s32 6, %v806
    %v808 = vrot.slane %v779, %v807
    %v809 = vlaneseq
    %v810 = vshrl.u32 %v809, 7
    %v811 = vsub.s32 7, %v810
    %v812 = vrot.slane %v779, %v811
    %v821 = vsub.f32 %v653, %v784
    %v822 = vsub.f32 %v654, %v784
    %v823 = vsub.f32 %v655, %v788
    %v824 = vsub.f32 %v656, %v788
    %v825 = vsub.f32 %v657, %v792
    %v826 = vsub.f32 %v658, %v792
    %v827 = vsub.f32 %v659, %v796
    %v828 = vsub.f32 %v660, %v796
    %v829 = vsub.f32 %v661, %v800
    %v830 = vsub.f32 %v662, %v800
    %v831 = vsub.f32 %v663, %v804
    %v832 = vsub.f32 %v664, %v804
    %v833 = vsub.f32 %v665, %v808
    %v834 = vsub.f32 %v666, %v808
    %v835 = vsub.f32 %v667, %v812
    %v836 = vsub.f32 %v668, %v812
    %v837 = vmul.f32 %v821, 1.442695
    %v838 = vpow.pop %v837
    %v839 = vmul.f32 %v822, 1.442695
    %v840 = vpow.pop %v839
    %v841 = vmul.f32 %v823, 1.442695
    %v842 = vpow.pop %v841
    %v843 = vmul.f32 %v824, 1.442695
    %v844 = vpow.pop %v843
    %v845 = vmul.f32 %v825, 1.442695
    %v846 = vpow.pop %v845
    %v847 = vmul.f32 %v826, 1.442695
    %v848 = vpow.pop %v847
    %v849 = vmul.f32 %v827, 1.442695
    %v850 = vpow.pop %v849
    %v851 = vmul.f32 %v828, 1.442695
    %v852 = vpow.pop %v851
    %v853 = vmul.f32 %v829, 1.442695
    %v854 = vpow.pop %v853
    %v855 = vmul.f32 %v830, 1.442695
    %v856 = vpow.pop %v855
    %v857 = vmul.f32 %v831, 1.442695
    %v858 = vpow.pop %v857
    %v859 = vmul.f32 %v832, 1.442695
    %v860 = vpow.pop %v859
    %v861 = vmul.f32 %v833, 1.442695
    %v862 = vpow.pop %v861
    %v863 = vmul.f32 %v834, 1.442695
    %v864 = vpow.pop %v863
    %v865 = vmul.f32 %v835, 1.442695
    %v866 = vpow.pop %v865
    %v867 = vmul.f32 %v836, 1.442695
    %v868 = vpow.pop %v867
    %885 = vset.pattern.permute.xlu0 0
    %886 = vperm.xlu0 %885, %v838
    %v887 = vpop.permute.xlu0 %886
    %888 = vset.pattern.permute.xlu0 0
    %889 = vperm.xlu0 %888, %v840
    %v890 = vpop.permute.xlu0 %889
    %891 = vset.pattern.permute.xlu0 0
    %892 = vperm.xlu0 %891, %v842
    %v893 = vpop.permute.xlu0 %892
    %894 = vset.pattern.permute.xlu0 0
    %895 = vperm.xlu0 %894, %v844
    %v896 = vpop.permute.xlu0 %895
    %897 = vset.pattern.permute.xlu0 0
    %898 = vperm.xlu0 %897, %v846
    %v899 = vpop.permute.xlu0 %898
    %900 = vset.pattern.permute.xlu0 0
    %901 = vperm.xlu0 %900, %v848
    %v902 = vpop.permute.xlu0 %901
    %903 = vset.pattern.permute.xlu0 0
    %904 = vperm.xlu0 %903, %v850
    %v905 = vpop.permute.xlu0 %904
    %906 = vset.pattern.permute.xlu0 0
    %907 = vperm.xlu0 %906, %v852
    %v908 = vpop.permute.xlu0 %907
    %909 = vset.pattern.permute.xlu0 0
    %910 = vperm.xlu0 %909, %v854
    %v911 = vpop.permute.xlu0 %910
    %912 = vset.pattern.permute.xlu0 0
    %913 = vperm.xlu0 %912, %v856
    %v914 = vpop.permute.xlu0 %913
    %915 = vset.pattern.permute.xlu0 0
    %916 = vperm.xlu0 %915, %v858
    %v917 = vpop.permute.xlu0 %916
    %918 = vset.pattern.permute.xlu0 0
    %919 = vperm.xlu0 %918, %v860
    %v920 = vpop.permute.xlu0 %919
    %921 = vset.pattern.permute.xlu0 0
    %922 = vperm.xlu0 %921, %v862
    %v923 = vpop.permute.xlu0 %922
    %924 = vset.pattern.permute.xlu0 0
    %925 = vperm.xlu0 %924, %v864
    %v926 = vpop.permute.xlu0 %925
    %927 = vset.pattern.permute.xlu0 0
    %928 = vperm.xlu0 %927, %v866
    %v929 = vpop.permute.xlu0 %928
    %930 = vset.pattern.permute.xlu0 0
    %931 = vperm.xlu0 %930, %v868
    %v932 = vpop.permute.xlu0 %931
    %v933 = vlaneseq
    %v934 = vshrl.u32 %v933, 7
    %v935 = vsub.s32 %v686, %v934
    %v936 = vrot.slane %v887, %v935
    %v937 = vlaneseq
    %v938 = vshrl.u32 %v937, 7
    %v939 = vsub.s32 %v691, %v938
    %v940 = vrot.slane %v890, %v939
    %v941 = vsel %vm696, %v940, %v936
    %v942 = vlaneseq
    %v943 = vshrl.u32 %v942, 7
    %v944 = vsub.s32 %v686, %v943
    %v945 = vrot.slane %v893, %v944
    %v946 = vlaneseq
    %v947 = vshrl.u32 %v946, 7
    %v948 = vsub.s32 %v691, %v947
    %v949 = vrot.slane %v896, %v948
    %v950 = vsel %vm696, %v949, %v945
    %v951 = vlaneseq
    %v952 = vshrl.u32 %v951, 7
    %v953 = vsub.s32 %v686, %v952
    %v954 = vrot.slane %v899, %v953
    %v955 = vlaneseq
    %v956 = vshrl.u32 %v955, 7
    %v957 = vsub.s32 %v691, %v956
    %v958 = vrot.slane %v902, %v957
    %v959 = vsel %vm696, %v958, %v954
    %v960 = vlaneseq
    %v961 = vshrl.u32 %v960, 7
    %v962 = vsub.s32 %v686, %v961
    %v963 = vrot.slane %v905, %v962
    %v964 = vlaneseq
    %v965 = vshrl.u32 %v964, 7
    %v966 = vsub.s32 %v691, %v965
    %v967 = vrot.slane %v908, %v966
    %v968 = vsel %vm696, %v967, %v963
    %v969 = vlaneseq
    %v970 = vshrl.u32 %v969, 7
    %v971 = vsub.s32 %v686, %v970
    %v972 = vrot.slane %v911, %v971
    %v973 = vlaneseq
    %v974 = vshrl.u32 %v973, 7
    %v975 = vsub.s32 %v691, %v974
    %v976 = vrot.slane %v914, %v975
    %v977 = vsel %vm696, %v976, %v972
    %v978 = vlaneseq
    %v979 = vshrl.u32 %v978, 7
    %v980 = vsub.s32 %v686, %v979
    %v981 = vrot.slane %v917, %v980
    %v982 = vlaneseq
    %v983 = vshrl.u32 %v982, 7
    %v984 = vsub.s32 %v691, %v983
    %v985 = vrot.slane %v920, %v984
    %v986 = vsel %vm696, %v985, %v981
    %v987 = vlaneseq
    %v988 = vshrl.u32 %v987, 7
    %v989 = vsub.s32 %v686, %v988
    %v990 = vrot.slane %v923, %v989
    %v991 = vlaneseq
    %v992 = vshrl.u32 %v991, 7
    %v993 = vsub.s32 %v691, %v992
    %v994 = vrot.slane %v926, %v993
    %v995 = vsel %vm696, %v994, %v990
    %v996 = vlaneseq
    %v997 = vshrl.u32 %v996, 7
    %v998 = vsub.s32 %v686, %v997
    %v999 = vrot.slane %v929, %v998
    %v1000 = vlaneseq
    %v1001 = vshrl.u32 %v1000, 7
    %v1002 = vsub.s32 %v691, %v1001
    %v1003 = vrot.slane %v932, %v1002
    %v1004 = vsel %vm696, %v1003, %v999
    %v1005 = vsel %vm761, %v950, %v941
    %v1006 = vsel %vm763, %v959, %v1005
    %v1007 = vsel %vm765, %v968, %v1006
    %v1008 = vsel %vm767, %v977, %v1007
    %v1009 = vsel %vm769, %v986, %v1008
    %v1010 = vsel %vm771, %v995, %v1009
    %v1011 = vsel %vm773, %v1004, %v1010
    %v1013 = vsel %vm776, %v1011, 0.0
    %1014 = vadd.xlane.f32.xlu0 %v1013
    %v1015 = vpop.xlane.xlu0 %1014
    %v1017 = vlaneseq
    %v1018 = vshrl.u32 %v1017, 7
    %v1019 = vsub.s32 0, %v1018
    %v1020 = vrot.slane %v1015, %v1019
    %v1021 = vlaneseq
    %v1022 = vshrl.u32 %v1021, 7
    %v1023 = vsub.s32 1, %v1022
    %v1024 = vrot.slane %v1015, %v1023
    %v1025 = vlaneseq
    %v1026 = vshrl.u32 %v1025, 7
    %v1027 = vsub.s32 2, %v1026
    %v1028 = vrot.slane %v1015, %v1027
    %v1029 = vlaneseq
    %v1030 = vshrl.u32 %v1029, 7
    %v1031 = vsub.s32 3, %v1030
    %v1032 = vrot.slane %v1015, %v1031
    %v1033 = vlaneseq
    %v1034 = vshrl.u32 %v1033, 7
    %v1035 = vsub.s32 4, %v1034
    %v1036 = vrot.slane %v1015, %v1035
    %v1037 = vlaneseq
    %v1038 = vshrl.u32 %v1037, 7
    %v1039 = vsub.s32 5, %v1038
    %v1040 = vrot.slane %v1015, %v1039
    %v1041 = vlaneseq
    %v1042 = vshrl.u32 %v1041, 7
    %v1043 = vsub.s32 6, %v1042
    %v1044 = vrot.slane %v1015, %v1043
    %v1045 = vlaneseq
    %v1046 = vshrl.u32 %v1045, 7
    %v1047 = vsub.s32 7, %v1046
    %v1048 = vrot.slane %v1015, %v1047
    %v1057 = vrcp.pop %v1020
    %v1058 = vmul.f32 %v838, %v1057
    %v1059 = vmul.f32 %v840, %v1057
    %v1060 = vrcp.pop %v1024
    %v1061 = vmul.f32 %v842, %v1060
    %v1062 = vmul.f32 %v844, %v1060
    %v1063 = vrcp.pop %v1028
    %v1064 = vmul.f32 %v846, %v1063
    %v1065 = vmul.f32 %v848, %v1063
    %v1066 = vrcp.pop %v1032
    %v1067 = vmul.f32 %v850, %v1066
    %v1068 = vmul.f32 %v852, %v1066
    %v1069 = vrcp.pop %v1036
    %v1070 = vmul.f32 %v854, %v1069
    %v1071 = vmul.f32 %v856, %v1069
    %v1072 = vrcp.pop %v1040
    %v1073 = vmul.f32 %v858, %v1072
    %v1074 = vmul.f32 %v860, %v1072
    %v1075 = vrcp.pop %v1044
    %v1076 = vmul.f32 %v862, %v1075
    %v1077 = vmul.f32 %v864, %v1075
    %v1078 = vrcp.pop %v1048
    %v1079 = vmul.f32 %v866, %v1078
    %v1080 = vmul.f32 %v868, %v1078
    %v1081 = vunpack.c.l.bf16 %v107
    %v1082 = vunpack.c.l.bf16 %v108
    %v1083 = vunpack.c.l.bf16 %v109
    %v1084 = vunpack.c.l.bf16 %v110
    %v1085 = vunpack.c.l.bf16 %v111
    %v1086 = vunpack.c.l.bf16 %v112
    %v1087 = vunpack.c.l.bf16 %v113
    %v1088 = vunpack.c.l.bf16 %v114
    %v1089 = vunpack.c.l.bf16 %v115
    %v1090 = vunpack.c.l.bf16 %v116
    %v1091 = vunpack.c.l.bf16 %v117
    %v1092 = vunpack.c.l.bf16 %v118
    %v1093 = vunpack.c.l.bf16 %v119
    %v1094 = vunpack.c.l.bf16 %v120
    %v1095 = vunpack.c.l.bf16 %v121
    %v1096 = vunpack.c.l.bf16 %v122
    %1098 = vset.pattern.permute.xlu0 0
    %1099 = vperm.xlu0 %1098, %v1058
    %v1100 = vpop.permute.xlu0 %1099
    %1103 = vset.pattern.permute.xlu0 0
    %1104 = vperm.xlu0 %1103, %v1059
    %v1105 = vpop.permute.xlu0 %1104
    %1108 = vset.pattern.permute.xlu0 0
    %1109 = vperm.xlu0 %1108, %v1061
    %v1110 = vpop.permute.xlu0 %1109
    %1113 = vset.pattern.permute.xlu0 0
    %1114 = vperm.xlu0 %1113, %v1062
    %v1115 = vpop.permute.xlu0 %1114
    %1118 = vset.pattern.permute.xlu0 0
    %1119 = vperm.xlu0 %1118, %v1064
    %v1120 = vpop.permute.xlu0 %1119
    %1123 = vset.pattern.permute.xlu0 0
    %1124 = vperm.xlu0 %1123, %v1065
    %v1125 = vpop.permute.xlu0 %1124
    %1128 = vset.pattern.permute.xlu0 0
    %1129 = vperm.xlu0 %1128, %v1067
    %v1130 = vpop.permute.xlu0 %1129
    %1133 = vset.pattern.permute.xlu0 0
    %1134 = vperm.xlu0 %1133, %v1068
    %v1135 = vpop.permute.xlu0 %1134
    %1138 = vset.pattern.permute.xlu0 0
    %1139 = vperm.xlu0 %1138, %v1070
    %v1140 = vpop.permute.xlu0 %1139
    %1143 = vset.pattern.permute.xlu0 0
    %1144 = vperm.xlu0 %1143, %v1071
    %v1145 = vpop.permute.xlu0 %1144
    %1148 = vset.pattern.permute.xlu0 0
    %1149 = vperm.xlu0 %1148, %v1073
    %v1150 = vpop.permute.xlu0 %1149
    %1153 = vset.pattern.permute.xlu0 0
    %1154 = vperm.xlu0 %1153, %v1074
    %v1155 = vpop.permute.xlu0 %1154
    %1158 = vset.pattern.permute.xlu0 0
    %1159 = vperm.xlu0 %1158, %v1076
    %v1160 = vpop.permute.xlu0 %1159
    %1163 = vset.pattern.permute.xlu0 0
    %1164 = vperm.xlu0 %1163, %v1077
    %v1165 = vpop.permute.xlu0 %1164
    %1168 = vset.pattern.permute.xlu0 0
    %1169 = vperm.xlu0 %1168, %v1079
    %v1170 = vpop.permute.xlu0 %1169
    %1173 = vset.pattern.permute.xlu0 0
    %1174 = vperm.xlu0 %1173, %v1080
    %v1175 = vpop.permute.xlu0 %1174
    %v1177 = vmul.f32 %v1081, %v1100
    %v1178 = vmul.f32 %v1082, %v1105
    %v1179 = vmul.f32 %v1083, %v1110
    %v1180 = vmul.f32 %v1084, %v1115
    %v1181 = vmul.f32 %v1085, %v1120
    %v1182 = vmul.f32 %v1086, %v1125
    %v1183 = vmul.f32 %v1087, %v1130
    %v1184 = vmul.f32 %v1088, %v1135
    %v1185 = vmul.f32 %v1089, %v1140
    %v1186 = vmul.f32 %v1090, %v1145
    %v1187 = vmul.f32 %v1091, %v1150
    %v1188 = vmul.f32 %v1092, %v1155
    %v1189 = vmul.f32 %v1093, %v1160
    %v1190 = vmul.f32 %v1094, %v1165
    %v1191 = vmul.f32 %v1095, %v1170
    %v1192 = vmul.f32 %v1096, %v1175
    %v1193 = vadd.f32 %v1177, %v1178
    %v1194 = vrot.slane %v1193, 4
    %v1195 = vadd.f32 %v1193, %v1194
    %v1196 = vrot.slane %v1195, 2
    %v1197 = vadd.f32 %v1195, %v1196
    %v1198 = vrot.slane %v1197, 1
    %v1199 = vadd.f32 %v1197, %v1198
    %v1200 = vadd.f32 %v1179, %v1180
    %v1201 = vrot.slane %v1200, 4
    %v1202 = vadd.f32 %v1200, %v1201
    %v1203 = vrot.slane %v1202, 2
    %v1204 = vadd.f32 %v1202, %v1203
    %v1205 = vrot.slane %v1204, 1
    %v1206 = vadd.f32 %v1204, %v1205
    %v1207 = vadd.f32 %v1181, %v1182
    %v1208 = vrot.slane %v1207, 4
    %v1209 = vadd.f32 %v1207, %v1208
    %v1210 = vrot.slane %v1209, 2
    %v1211 = vadd.f32 %v1209, %v1210
    %v1212 = vrot.slane %v1211, 1
    %v1213 = vadd.f32 %v1211, %v1212
    %v1214 = vadd.f32 %v1183, %v1184
    %v1215 = vrot.slane %v1214, 4
    %v1216 = vadd.f32 %v1214, %v1215
    %v1217 = vrot.slane %v1216, 2
    %v1218 = vadd.f32 %v1216, %v1217
    %v1219 = vrot.slane %v1218, 1
    %v1220 = vadd.f32 %v1218, %v1219
    %v1221 = vadd.f32 %v1185, %v1186
    %v1222 = vrot.slane %v1221, 4
    %v1223 = vadd.f32 %v1221, %v1222
    %v1224 = vrot.slane %v1223, 2
    %v1225 = vadd.f32 %v1223, %v1224
    %v1226 = vrot.slane %v1225, 1
    %v1227 = vadd.f32 %v1225, %v1226
    %v1228 = vadd.f32 %v1187, %v1188
    %v1229 = vrot.slane %v1228, 4
    %v1230 = vadd.f32 %v1228, %v1229
    %v1231 = vrot.slane %v1230, 2
    %v1232 = vadd.f32 %v1230, %v1231
    %v1233 = vrot.slane %v1232, 1
    %v1234 = vadd.f32 %v1232, %v1233
    %v1235 = vadd.f32 %v1189, %v1190
    %v1236 = vrot.slane %v1235, 4
    %v1237 = vadd.f32 %v1235, %v1236
    %v1238 = vrot.slane %v1237, 2
    %v1239 = vadd.f32 %v1237, %v1238
    %v1240 = vrot.slane %v1239, 1
    %v1241 = vadd.f32 %v1239, %v1240
    %v1242 = vadd.f32 %v1191, %v1192
    %v1243 = vrot.slane %v1242, 4
    %v1244 = vadd.f32 %v1242, %v1243
    %v1245 = vrot.slane %v1244, 2
    %v1246 = vadd.f32 %v1244, %v1245
    %v1247 = vrot.slane %v1246, 1
    %v1248 = vadd.f32 %v1246, %v1247
    %v1249 = vpack.c.bf16 %v1199, %v1199
    %v1250 = vpack.c.bf16 %v1206, %v1206
    %v1251 = vpack.c.bf16 %v1213, %v1213
    %v1252 = vpack.c.bf16 %v1220, %v1220
    %v1253 = vpack.c.bf16 %v1227, %v1227
    %v1254 = vpack.c.bf16 %v1234, %v1234
    %v1255 = vpack.c.bf16 %v1241, %v1241
    %v1256 = vpack.c.bf16 %v1248, %v1248
    %v1257 = vld [vmem:[#allocation10] sm:$0xf]
    %v1258 = vld [vmem:[#allocation10 + $0x4] sm:$0xf]
    %v1259 = vld [vmem:[#allocation10 + $0x8] sm:$0xf]
    %v1260 = vld [vmem:[#allocation10 + $0xc] sm:$0xf]
    %v1261 = vld [vmem:[#allocation10 + $0x10] sm:$0xf]
    %v1262 = vld [vmem:[#allocation10 + $0x14] sm:$0xf]
    %v1263 = vld [vmem:[#allocation10 + $0x18] sm:$0xf]
    %v1264 = vld [vmem:[#allocation10 + $0x1c] sm:$0xf]
    %v1265 = vld [vmem:[#allocation10 + $0x20] sm:$0xf]
    %v1266 = vld [vmem:[#allocation10 + $0x24] sm:$0xf]
    %v1267 = vld [vmem:[#allocation10 + $0x28] sm:$0xf]
    %v1268 = vld [vmem:[#allocation10 + $0x2c] sm:$0xf]
    %v1269 = vld [vmem:[#allocation10 + $0x30] sm:$0xf]
    %v1270 = vld [vmem:[#allocation10 + $0x34] sm:$0xf]
    %v1271 = vld [vmem:[#allocation10 + $0x38] sm:$0xf]
    %v1272 = vld [vmem:[#allocation10 + $0x3c] sm:$0xf]
    %v1273 = vld [vmem:[%s10] sm:$0x1]
    %v1275 = vlaneseq
    %v1276 = vshrl.u32 %v1275, 7
    %v1277 = vsub.s32 0, %v1276
    %v1278 = vrot.slane %v1273, %v1277
    %v1288 = vunpack.c.l.b16 %v1249
    %v1289 = vunpack.c.l.b16 %v1250
    %v1290 = vunpack.c.l.b16 %v1251
    %v1291 = vunpack.c.l.b16 %v1252
    %v1292 = vunpack.c.l.b16 %v1253
    %v1293 = vunpack.c.l.b16 %v1254
    %v1294 = vunpack.c.l.b16 %v1255
    %v1295 = vunpack.c.l.b16 %v1256
    %v1296 = vsel %vm761, %v1289, %v1288
    %v1297 = vsel %vm763, %v1290, %v1296
    %v1298 = vsel %vm765, %v1291, %v1297
    %v1299 = vsel %vm767, %v1292, %v1298
    %v1300 = vsel %vm769, %v1293, %v1299
    %v1301 = vsel %vm771, %v1294, %v1300
    %v1302 = vsel %vm773, %v1295, %v1301
    %v1303 = vpack.c.b16 %v1302, %v1302
    %v1321 = vunpack.c.l.b16 %v1257
    %v1322 = vunpack.c.l.b16 %v1258
    %v1323 = vunpack.c.l.b16 %v1259
    %v1324 = vunpack.c.l.b16 %v1260
    %v1325 = vunpack.c.l.b16 %v1261
    %v1326 = vunpack.c.l.b16 %v1262
    %v1327 = vunpack.c.l.b16 %v1263
    %v1328 = vunpack.c.l.b16 %v1264
    %v1329 = vunpack.c.l.b16 %v1265
    %v1330 = vunpack.c.l.b16 %v1266
    %v1331 = vunpack.c.l.b16 %v1267
    %v1332 = vunpack.c.l.b16 %v1268
    %v1333 = vunpack.c.l.b16 %v1269
    %v1334 = vunpack.c.l.b16 %v1270
    %v1335 = vunpack.c.l.b16 %v1271
    %v1336 = vunpack.c.l.b16 %v1272
    %v1337 = vpack.c.b16 %v1322, %v1321
    %v1338 = vpack.c.b16 %v1324, %v1323
    %v1339 = vpack.c.b16 %v1326, %v1325
    %v1340 = vpack.c.b16 %v1328, %v1327
    %v1341 = vpack.c.b16 %v1330, %v1329
    %v1342 = vpack.c.b16 %v1332, %v1331
    %v1343 = vpack.c.b16 %v1334, %v1333
    %v1344 = vpack.c.b16 %v1336, %v1335
    %1353 = vmatprep.subr.bf16.mxu0 0
    %1354 = vmatpush1.bf16.msra.mxu0 %v1337
    %1355 = vmatprep.subr.bf16.mxu0 0
    %1356 = vmatpush1.bf16.msra.mxu0 %v1338
    %1357 = vmatprep.subr.bf16.mxu0 0
    %1358 = vmatpush1.bf16.msra.mxu0 %v1339
    %1359 = vmatprep.subr.bf16.mxu0 0
    %1360 = vmatpush1.bf16.msra.mxu0 %v1340
    %1361 = vmatprep.subr.bf16.mxu0 0
    %1362 = vmatpush1.bf16.msra.mxu0 %v1341
    %1363 = vmatprep.subr.bf16.mxu0 0
    %1364 = vmatpush1.bf16.msra.mxu0 %v1342
    %1365 = vmatprep.subr.bf16.mxu0 0
    %1366 = vmatpush1.bf16.msra.mxu0 %v1343
    %1367 = vmatprep.subr.bf16.mxu0 0
    %1368 = vmatpush1.bf16.msra.mxu0 %v1344
    %1369 = vmatprep.subr.bf16.mxu0 0
    %1370 = vmatpush1.bf16.msra.mxu0 0
    %1371 = vmatprep.subr.bf16.mxu0 0
    %1372 = vmatpush1.bf16.msra.mxu0 0
    %1373 = vmatprep.subr.bf16.mxu0 0
    %1374 = vmatpush1.bf16.msra.mxu0 0
    %1375 = vmatprep.subr.bf16.mxu0 0
    %1376 = vmatpush1.bf16.msra.mxu0 0
    %1377 = vmatprep.subr.bf16.mxu0 0
    %1378 = vmatpush1.bf16.msra.mxu0 0
    %1379 = vmatprep.subr.bf16.mxu0 0
    %1380 = vmatpush1.bf16.msra.mxu0 0
    %1381 = vmatprep.subr.bf16.mxu0 0
    %1382 = vmatpush1.bf16.msra.mxu0 0
    %1383 = vmatprep.subr.bf16.mxu0 0
    %1384 = vmatpush1.bf16.msra.mxu0 0
    %1385 = vmatprep.mubr.bf16.mxu0 0
    %1386 = vmatmul.mubr.bf16.gmra.mrb[0].mxu0 %v1303
    %v1387 = vpop.f32.mrb[0].mxu0
    %v1388 = vadd.f32 %v1278, %v1387
    %v1389 = vpop.f32.mrb[0].mxu0
    %v1390 = vpop.f32.mrb[0].mxu0
    %v1391 = vpop.f32.mrb[0].mxu0
    %1392 = vdwg.mxu0
    %v1393 = vld [vmem:[%s2] sm:$0xf]
    %1394 = vmatprep.subr.bf16.mxu0 0
    %1395 = vmatpush1.bf16.msra.mxu0 %v1337
    %1396 = vmatprep.subr.bf16.mxu0 0
    %1397 = vmatpush1.bf16.msra.mxu0 %v1338
    %1398 = vmatprep.subr.bf16.mxu0 0
    %1399 = vmatpush1.bf16.msra.mxu0 %v1339
    %1400 = vmatprep.subr.bf16.mxu0 0
    %1401 = vmatpush1.bf16.msra.mxu0 %v1340
    %1402 = vmatprep.subr.bf16.mxu0 0
    %1403 = vmatpush1.bf16.msra.mxu0 %v1341
    %1404 = vmatprep.subr.bf16.mxu0 0
    %1405 = vmatpush1.bf16.msra.mxu0 %v1342
    %1406 = vmatprep.subr.bf16.mxu0 0
    %1407 = vmatpush1.bf16.msra.mxu0 %v1343
    %1408 = vmatprep.subr.bf16.mxu0 0
    %1409 = vmatpush1.bf16.msra.mxu0 %v1344
    %1410 = vmatprep.subr.bf16.mxu0 0
    %1411 = vmatpush1.bf16.msra.mxu0 0
    %1412 = vmatprep.subr.bf16.mxu0 0
    %1413 = vmatpush1.bf16.msra.mxu0 0
    %1414 = vmatprep.subr.bf16.mxu0 0
    %1415 = vmatpush1.bf16.msra.mxu0 0
    %1416 = vmatprep.subr.bf16.mxu0 0
    %1417 = vmatpush1.bf16.msra.mxu0 0
    %1418 = vmatprep.subr.bf16.mxu0 0
    %1419 = vmatpush1.bf16.msra.mxu0 0
    %1420 = vmatprep.subr.bf16.mxu0 0
    %1421 = vmatpush1.bf16.msra.mxu0 0
    %1422 = vmatprep.subr.bf16.mxu0 0
    %1423 = vmatpush1.bf16.msra.mxu0 0
    %1424 = vmatprep.subr.bf16.mxu0 0
    %1425 = vmatpush1.bf16.msra.mxu0 0
    %1426 = vmatprep.mubr.bf16.mxu0 0
    %1427 = vmatmul.mubr.bf16.gmra.mrb[0].mxu0 %v1393
    %v1428 = vpop.f32.mrb[0].mxu0
    %v1429 = vadd.f32 %v1278, %v1428
    %v1430 = vpop.f32.mrb[0].mxu0
    %v1431 = vpop.f32.mrb[0].mxu0
    %v1432 = vpop.f32.mrb[0].mxu0
    %1433 = vdwg.mxu0
    %v1434 = vld [vmem:[%s11] sm:$0x1]
    %v1435 = vunpack.c.l.bf16 %v1434
    %v1436 = vadd.f32 %v1388, %v462
    %v1437 = vtanh.pop %v1436
    %v1438 = vlaneseq
    %v1439 = vshrl.u32 %v1438, 7
    %v1440 = vsub.s32 0, %v1439
    %v1441 = vrot.slane %v1435, %v1440
    %v1442 = vmul.f32 %v1437, %v1441
    %1443 = vadd.xlane.f32.xlu0 %v1442
    %v1444 = vpop.xlane.xlu0 %1443
    %v1445 = vld [vmem:[#allocation3] sm:$0x1]
    %v1447 = vlaneseq
    %v1448 = vshrl.u32 %v1447, 7
    %v1449 = vsub.s32 0, %v1448
    %v1450 = vrot.slane %v1445, %v1449
    %v1452 = vadd.f32 %v1444, %v1450
    %v1453 = vadd.f32 %v1429, %v462
    %v1454 = vtanh.pop %v1453
    %v1455 = vmul.f32 %v1454, %v1441
    %1456 = vadd.xlane.f32.xlu0 %v1455
    %v1457 = vpop.xlane.xlu0 %1456
    %v1458 = vadd.f32 %v1457, %v1450
    %v1459 = vmax.f32 %v1452, %v1458
    %v1460 = vsub.f32 %v1452, %v1459
    %v1461 = vmul.f32 %v1460, 1.442695
    %v1462 = vpow.pop %v1461
    %v1463 = vsub.f32 %v1458, %v1459
    %v1464 = vmul.f32 %v1463, 1.442695
    %v1465 = vpow.pop %v1464
    %v1466 = vadd.f32 %v1462, %v1465
    %v1467 = vrcp.pop %v1466
    %v1468 = vmul.f32 %v1462, %v1467
    %v1469 = vmul.f32 %v1465, %v1467
    %v1470 = vunpack.c.l.bf16 %v1393
    %1472 = vset.pattern.permute.xlu0 0
    %1473 = vperm.xlu0 %1472, %v1468
    %v1474 = vpop.permute.xlu0 %1473
    %v1484 = vsel %vm761, %v1206, %v1199
    %v1485 = vsel %vm763, %v1213, %v1484
    %v1486 = vsel %vm765, %v1220, %v1485
    %v1487 = vsel %vm767, %v1227, %v1486
    %v1488 = vsel %vm769, %v1234, %v1487
    %v1489 = vsel %vm771, %v1241, %v1488
    %v1490 = vsel %vm773, %v1248, %v1489
    %v1492 = vmul.f32 %v1474, %v1490
    %1494 = vset.pattern.permute.xlu0 0
    %1495 = vperm.xlu0 %1494, %v1469
    %v1496 = vpop.permute.xlu0 %1495
    %v1498 = vmul.f32 %v1496, %v1470
    %v1499 = vadd.f32 %v1492, %v1498
    %1500 = vst [vmem:[#allocation12] sm:$0xff] %v1499
    %vm1501 = vcmp.eq.s32.totalorder %v686, 0
    %v1502 = vsel %vm1501, %v1474, %v1496
    %vm1503 = vcmask 15360
    %1504 = vst.msk [vmem:[%s14] sm:$0xff] %vm1503, %v1502
    // Predicated region
    $region70: #{tpu_custom_call.1} parent=1 // pred_check
      _
    $region71: #{tpu_custom_call.1} parent=1 // pred_check_branch
      %1506 = sbr.rel (0) target = $region73
    $region72: #{tpu_custom_call.1} parent=1 // pred_region
      %s1508 = ssub.s32 128, 128
      %1509 = vsyncadd [#allocation6], %s1508
      %s1511 = sshll.u32 [#allocation12], 4
      %s1512 = int_to_ptr.vmem [resolvable:$true] %s1511
      %1514 = dma.vmem_to_hbm [thread:$0]  %s1512, 128, %s13, [#allocation6]
    $region73: #{tpu_custom_call.1} parent=1 // pred_fallthru
      _
    // Predicated region
    $region74: #{tpu_custom_call.1} parent=1 // pred_check
      _
    $region75: #{tpu_custom_call.1} parent=1 // pred_check_branch
      %1516 = sbr.rel (0) target = $region77
    $region76: #{tpu_custom_call.1} parent=1 // pred_region
      _
    $region77: #{tpu_custom_call.1} parent=1 // pred_fallthru
      _
    // Predicated region
    $region78: #{tpu_custom_call.1} parent=1 // pred_check
      _
    $region79: #{tpu_custom_call.1} parent=1 // pred_check_branch
      %1518 = sbr.rel (0) target = $region81
    $region80: #{tpu_custom_call.1} parent=1 // pred_region
      %1519 = dma.done [#allocation6], 128
    $region81: #{tpu_custom_call.1} parent=1 // pred_fallthru
      _
    // Predicated region
    $region82: #{tpu_custom_call.1} parent=1 // pred_check
      _
    $region83: #{tpu_custom_call.1} parent=1 // pred_check_branch
      %1521 = sbr.rel (0) target = $region85
    $region84: #{tpu_custom_call.1} parent=1 // pred_region
      _
    $region85: #{tpu_custom_call.1} parent=1 // pred_fallthru
      _
    %1522 = vsyncpa [#allocation5], 1
    %1523 = vsyncpa [#allocation8], 1
    %1524 = vsyncpa [#allocation11], 1
    %1525 = vsyncpa [#allocation6], 1

</llo_original>
